<compile_context>
chip_gen: v7x
topology: tpu7x:2x2x1
jax: 0.10.0
libtpu: 0.0.40
codegen_flags: <defaults>
</compile_context>

<pallas_src>
import functools

import jax
import jax.numpy as jnp
import numpy as np
from jax import lax
from jax.experimental import pallas as pl
from jax.experimental.pallas import tpu as pltpu


def _round_up(x, m):
    return (x + m - 1) // m * m


def _padded_tile_bytes(shape, itemsize=4):
    """Bytes of a buffer once padded to (8, 128) tiles in VMEM."""
    shape = tuple(shape)
    if len(shape) == 1:
        shape = (1,) + shape
    lead = int(np.prod(shape[:-2])) if len(shape) > 2 else 1
    rows = _round_up(shape[-2], 8)
    cols = _round_up(shape[-1], 128)
    return lead * rows * cols * itemsize


def gru_head_kernel(x2d_ref,   # (P*Bp, M)   time-major, batch-padded inputs
                    wx_ref,    # (M, 3*Hp)   fused input weights   [r|z|n]
                    bx_ref,    # (1, 3*Hp)   b_ih + (b_hh for r,z) [r|z|n]
                    wh_ref,    # (Hp, 3*Hp)  fused hidden weights  [r|z|n]
                    bhn_ref,   # (1, Hp)     b_hh for the n gate only
                    wlin_ref,  # (Hp, Npad)  output head, zero-padded
                    blin_ref,  # (1, Npad)
                    out_ref,   # (Bp, Npad)
                    xw_ref,    # VMEM scratch (P*Bp, 3*Hp): hoisted pre-acts
                    *, n_steps, batch_pad, hid_pad):
    Hp = hid_pad

    # ---- Phase 1: hoist every input projection into one big MXU matmul. ----
    xw_ref[...] = (
        jnp.dot(x2d_ref[...], wx_ref[...], preferred_element_type=jnp.float32)
        + bx_ref[...])

    bhn = bhn_ref[...]                          # tiny (1, Hp): safe to hoist

    # ---- Phase 2: sequential recurrence; only h @ Wh is on the critical path.
    # PyTorch GRU (gate order r, z, n):
    #   r = sigmoid(xw_r + hw_r)                 (b_hr folded into xw_r)
    #   z = sigmoid(xw_z + hw_z)                 (b_hz folded into xw_z)
    #   n = tanh(xw_n + r * (hw_n + b_hn))
    #   h' = (1 - z) * n + z * h
    def step(t, h):
        row = pl.multiple_of(t * batch_pad, 8)          # sublane-aligned start
        xw = xw_ref[pl.ds(row, batch_pad), :]           # (Bp, 3Hp)
        # Wh stays in VMEM (loop-invariant); reloading avoids vreg spills.
        hw = jnp.dot(h, wh_ref[...], preferred_element_type=jnp.float32)
        r = jax.nn.sigmoid(xw[:, :Hp] + hw[:, :Hp])
        z = jax.nn.sigmoid(xw[:, Hp:2 * Hp] + hw[:, Hp:2 * Hp])
        n = jnp.tanh(xw[:, 2 * Hp:] + r * (hw[:, 2 * Hp:] + bhn))
        return n + z * (h - n)                          # == (1 - z)*n + z*h

    h0 = jnp.zeros((batch_pad, Hp), jnp.float32)
    h_final = lax.fori_loop(0, n_steps, step, h0,
                            unroll=True if n_steps <= 16 else 8)

    # ---- Phase 3: lane-dense linear head on the final hidden state. ----
    out_ref[...] = (
        jnp.dot(h_final, wlin_ref[...], preferred_element_type=jnp.float32)
        + blin_ref[...]).astype(out_ref.dtype)


@jax.jit
def gru_linear_forward(x, fused):
    """x: (batch, window, n_val) -> (batch, n_val)."""
    B, P, M = x.shape
    Hp = fused["wh"].shape[0]
    Npad = fused["wlin"].shape[1]
    n_out = M                       # Linear maps hidRNN -> n_val (= M)
    Bp = _round_up(B, 8)            # pad batch to a sublane multiple

    # Time-major (matches the module's permute) + zero-pad batch; negligible
    # at these sizes.
    # TODO(synk): at production P*B, fold the permute into a time-chunked,
    # double-buffered Phase-1 pipeline (BlockSpec index_map) instead of a
    # wrapper-side transpose + monolithic xw scratch (v7x 64 MiB VMEM).
    x_tm = jnp.transpose(x, (1, 0, 2))                        # (P, B, M)
    x_tm = jnp.pad(x_tm, ((0, 0), (0, Bp - B), (0, 0)))       # (P, Bp, M)
    x2d = x_tm.reshape(P * Bp, M)                             # (P*Bp, M)

    # VMEM budget: no grid -> every operand is single-buffered.
    buffers = [(P * Bp, M), (M, 3 * Hp), (1, 3 * Hp), (Hp, 3 * Hp),
               (1, Hp), (Hp, Npad), (1, Npad), (Bp, Npad),     # in + out
               (P * Bp, 3 * Hp)]                               # scratch
    needed = sum(_padded_tile_bytes(s) for s in buffers)
    vmem_limit = int(min(128 << 20, max(2 * needed + (2 << 20), 16 << 20)))
    try:
        phys = pltpu.get_tpu_info().vmem_capacity_bytes
    except Exception:
        phys = None
    if phys is not None and needed > phys:
        raise ValueError(
            f"GRU kernel VMEM footprint {needed} B exceeds chip VMEM {phys} B; "
            "time-chunk Phase 1 before scaling to this size.")
    # TODO(synk): add a batch grid axis with dimension_semantics=("parallel",)
    # to split the independent per-batch recurrences across v7x's two
    # TensorCores once Bp >= 16.

    kernel = functools.partial(gru_head_kernel, n_steps=P, batch_pad=Bp,
                               hid_pad=Hp)
    vmem = pl.BlockSpec(memory_space=pltpu.MemorySpace.VMEM)

    out = pl.pallas_call(
        kernel,
        out_shape=jax.ShapeDtypeStruct((Bp, Npad), jnp.float32),
        in_specs=[vmem] * 7,
        out_specs=vmem,
        scratch_shapes=[pltpu.VMEM((P * Bp, 3 * Hp), jnp.float32)],
        compiler_params=pltpu.CompilerParams(vmem_limit_bytes=vmem_limit),
    )(x2d, fused["wx"], fused["bx"], fused["wh"], fused["bhn"],
      fused["wlin"], fused["blin"])

    return out[:B, :n_out]


def init_torch_params(key, n_val, hidRNN):
    """PyTorch-layout GRU + Linear params, uniform(-1/sqrt(H), 1/sqrt(H))."""
    H, M = hidRNN, n_val
    k = 1.0 / np.sqrt(H)
    keys = jax.random.split(key, 6)
    u = lambda kk, shape: jax.random.uniform(kk, shape, jnp.float32, -k, k)
    return {
        "w_ih": u(keys[0], (3 * H, M)),   # gate order (r, z, n)
        "w_hh": u(keys[1], (3 * H, H)),
        "b_ih": u(keys[2], (3 * H,)),
        "b_hh": u(keys[3], (3 * H,)),
        "w_lin": u(keys[4], (M, H)),      # nn.Linear(H, M).weight
        "b_lin": u(keys[5], (M,)),
    }


def prepare_params(raw, lane=128):
    """Fuse gates, lane-align each gate block to Hp = round_up(H, 128), fold
    the r/z hidden biases into the input bias, and pre-transpose all weights
    so every kernel matmul is (rows, K) @ (K, N)."""
    H = raw["w_hh"].shape[1]
    n_out = raw["w_lin"].shape[0]
    Hp = _round_up(H, lane)
    Npad = _round_up(n_out, lane)

    def pad_gates(mat_t):
        """(K, 3H), columns [r|z|n] -> (K, 3Hp), each gate block zero-padded
        to Hp columns so gate boundaries land on 128-lane multiples."""
        K = mat_t.shape[0]
        out = jnp.zeros((K, 3 * Hp), jnp.float32)
        for g in range(3):
            out = out.at[:, g * Hp:g * Hp + H].set(mat_t[:, g * H:(g + 1) * H])
        return out

    # b_hr and b_hz are purely additive with b_ir / b_iz -> fold them in.
    # b_hn must stay separate (PyTorch multiplies it by r).
    bx_raw = raw["b_ih"] + jnp.concatenate(
        [raw["b_hh"][:2 * H], jnp.zeros((H,), jnp.float32)])
    wx = pad_gates(raw["w_ih"].T)                               # (M, 3Hp)
    bx = pad_gates(bx_raw[None, :])                             # (1, 3Hp)

    # Hidden-side weights: zero-pad the h rows to Hp so padded lanes of h
    # never feed back into valid gates.
    wh = jnp.zeros((Hp, 3 * Hp), jnp.float32).at[:H, :].set(
        pad_gates(raw["w_hh"].T))                               # (Hp, 3Hp)
    bhn = jnp.zeros((1, Hp), jnp.float32).at[:, :H].set(raw["b_hh"][2 * H:])

    # Output head, zero-padded (padded rows of h contribute nothing).
    wlin = jnp.zeros((Hp, Npad), jnp.float32).at[:H, :n_out].set(
        raw["w_lin"].T)
    blin = jnp.zeros((1, Npad), jnp.float32).at[:, :n_out].set(raw["b_lin"])

    return {"wx": wx, "bx": bx, "wh": wh, "bhn": bhn,
            "wlin": wlin, "blin": blin}


def reference_forward(x, raw):
    """Pure-JAX reference of the same GRU + Linear (for verification)."""
    B, P, M = x.shape
    H = raw["w_hh"].shape[1]
    wx, wh = raw["w_ih"].T, raw["w_hh"].T
    bx, bh = raw["b_ih"][None, :], raw["b_hh"][None, :]
    h = jnp.zeros((B, H), jnp.float32)
    for t in range(P):
        xw = x[:, t, :] @ wx + bx
        hw = h @ wh + bh
        r = jax.nn.sigmoid(xw[:, :H] + hw[:, :H])
        z = jax.nn.sigmoid(xw[:, H:2 * H] + hw[:, H:2 * H])
        n = jnp.tanh(xw[:, 2 * H:] + r * hw[:, 2 * H:])
        h = (1.0 - z) * n + z * h
    return h @ raw["w_lin"].T + raw["b_lin"][None, :]


if __name__ == "__main__":
    batch, window, n_val, hidRNN = 2, 8, 4, 32

    key = jax.random.PRNGKey(0)
    kx, kp = jax.random.split(key)
    x = jax.random.normal(kx, (batch, window, n_val), jnp.float32)

    raw = init_torch_params(kp, n_val, hidRNN)
    fused = prepare_params(raw)

    out = gru_linear_forward(x, fused)
    out = jax.block_until_ready(out)

    ref = reference_forward(x, raw)
    np.testing.assert_allclose(np.asarray(out), np.asarray(ref),
                               rtol=1e-5, atol=1e-5)
    print("KERNEL_OK")
</pallas_src>

<mosaic_0001>
module attributes {stable_mosaic.version = 11 : i64} {
  func.func @gru_head_kernel(%arg0: memref<64x4xf32, #tpu.memory_space<vmem>>, %arg1: memref<4x384xf32, #tpu.memory_space<vmem>>, %arg2: memref<1x384xf32, #tpu.memory_space<vmem>>, %arg3: memref<128x384xf32, #tpu.memory_space<vmem>>, %arg4: memref<1x128xf32, #tpu.memory_space<vmem>>, %arg5: memref<128x128xf32, #tpu.memory_space<vmem>>, %arg6: memref<1x128xf32, #tpu.memory_space<vmem>>, %arg7: memref<8x128xf32, #tpu.memory_space<vmem>>, %arg8: memref<64x384xf32, #tpu.memory_space<vmem>>) attributes {dimension_semantics = [], scalar_prefetch = 0 : i64, scratch_operands = 1 : i64, tpu.core_type = #tpu.core_type<tc>} {
    %c0 = arith.constant 0 : index
    %c0_0 = arith.constant 0 : index
    %0 = vector.load %arg0[%c0, %c0_0] : memref<64x4xf32, #tpu.memory_space<vmem>>, vector<64x4xf32>
    %c0_1 = arith.constant 0 : index
    %c0_2 = arith.constant 0 : index
    %1 = vector.load %arg1[%c0_1, %c0_2] : memref<4x384xf32, #tpu.memory_space<vmem>>, vector<4x384xf32>
    %cst = arith.constant dense<0.000000e+00> : vector<64x384xf32>
    %2 = tpu.matmul %0, %1, %cst {dimension_numbers = #tpu.dot_dimension_numbers<[1], [0], [0], [1], [0, 0, 1, 1], [], []>} : vector<64x4xf32>, vector<4x384xf32>, vector<64x384xf32> -> vector<64x384xf32>
    %c0_3 = arith.constant 0 : index
    %c0_4 = arith.constant 0 : index
    %3 = vector.load %arg2[%c0_3, %c0_4] : memref<1x384xf32, #tpu.memory_space<vmem>>, vector<1x384xf32>
    %4 = vector.broadcast %3 : vector<1x384xf32> to vector<64x384xf32>
    %5 = arith.addf %2, %4 : vector<64x384xf32>
    %c0_5 = arith.constant 0 : index
    %c0_6 = arith.constant 0 : index
    %6 = vector.load %arg8[%c0_5, %c0_6] : memref<64x384xf32, #tpu.memory_space<vmem>>, vector<64x384xf32>
    tpu.vector_store %arg8[%c0_5, %c0_6], %5 {strides = array<i32>} : memref<64x384xf32, #tpu.memory_space<vmem>>, vector<64x384xf32>,
    %c0_7 = arith.constant 0 : index
    %c0_8 = arith.constant 0 : index
    %7 = vector.load %arg4[%c0_7, %c0_8] : memref<1x128xf32, #tpu.memory_space<vmem>>, vector<1x128xf32>
    %cst_9 = arith.constant 0.000000e+00 : f32
    %8 = vector.broadcast %cst_9 : f32 to vector<8x128xf32>
    %c0_i32 = arith.constant 0 : i32
    %c8_i32 = arith.constant 8 : i32
    %9 = arith.muli %c0_i32, %c8_i32 : i32
    %10 = tpu.assume_multiple %9, 8 : i32
    %11 = arith.index_cast %10 : i32 to index
    %c0_10 = arith.constant 0 : index
    %12 = vector.load %arg8[%11, %c0_10] : memref<64x384xf32, #tpu.memory_space<vmem>>, vector<8x384xf32>
    %c0_11 = arith.constant 0 : index
    %c0_12 = arith.constant 0 : index
    %13 = vector.load %arg3[%c0_11, %c0_12] : memref<128x384xf32, #tpu.memory_space<vmem>>, vector<128x384xf32>
    %cst_13 = arith.constant dense<0.000000e+00> : vector<8x384xf32>
    %14 = tpu.matmul %8, %13, %cst_13 {dimension_numbers = #tpu.dot_dimension_numbers<[1], [0], [0], [1], [0, 0, 1, 1], [], []>} : vector<8x128xf32>, vector<128x384xf32>, vector<8x384xf32> -> vector<8x384xf32>
    %15 = vector.extract_strided_slice %12 {offsets = [0, 0], sizes = [8, 128], strides = [1, 1]} : vector<8x384xf32> to vector<8x128xf32>
    %16 = vector.extract_strided_slice %14 {offsets = [0, 0], sizes = [8, 128], strides = [1, 1]} : vector<8x384xf32> to vector<8x128xf32>
    %17 = arith.addf %15, %16 : vector<8x128xf32>
    %18 = arith.negf %17 : vector<8x128xf32>
    %19 = math.exp %18 : vector<8x128xf32>
    %cst_14 = arith.constant 1.000000e+00 : f32
    %20 = vector.broadcast %cst_14 : f32 to vector<8x128xf32>
    %21 = arith.addf %20, %19 : vector<8x128xf32>
    %22 = arith.divf %20, %21 : vector<8x128xf32>
    %23 = vector.extract_strided_slice %12 {offsets = [0, 128], sizes = [8, 128], strides = [1, 1]} : vector<8x384xf32> to vector<8x128xf32>
    %24 = vector.extract_strided_slice %14 {offsets = [0, 128], sizes = [8, 128], strides = [1, 1]} : vector<8x384xf32> to vector<8x128xf32>
    %25 = arith.addf %23, %24 : vector<8x128xf32>
    %26 = arith.negf %25 : vector<8x128xf32>
    %27 = math.exp %26 : vector<8x128xf32>
    %cst_15 = arith.constant 1.000000e+00 : f32
    %28 = vector.broadcast %cst_15 : f32 to vector<8x128xf32>
    %29 = arith.addf %28, %27 : vector<8x128xf32>
    %30 = arith.divf %28, %29 : vector<8x128xf32>
    %31 = vector.extract_strided_slice %12 {offsets = [0, 256], sizes = [8, 128], strides = [1, 1]} : vector<8x384xf32> to vector<8x128xf32>
    %32 = vector.extract_strided_slice %14 {offsets = [0, 256], sizes = [8, 128], strides = [1, 1]} : vector<8x384xf32> to vector<8x128xf32>
    %33 = vector.broadcast %7 : vector<1x128xf32> to vector<8x128xf32>
    %34 = arith.addf %32, %33 : vector<8x128xf32>
    %35 = arith.mulf %22, %34 : vector<8x128xf32>
    %36 = arith.addf %31, %35 : vector<8x128xf32>
    %37 = math.tanh %36 : vector<8x128xf32>
    %38 = arith.subf %8, %37 : vector<8x128xf32>
    %39 = arith.mulf %30, %38 : vector<8x128xf32>
    %40 = arith.addf %37, %39 : vector<8x128xf32>
    %c1_i32 = arith.constant 1 : i32
    %c8_i32_16 = arith.constant 8 : i32
    %41 = arith.muli %c1_i32, %c8_i32_16 : i32
    %42 = tpu.assume_multiple %41, 8 : i32
    %43 = arith.index_cast %42 : i32 to index
    %c0_17 = arith.constant 0 : index
    %44 = vector.load %arg8[%43, %c0_17] : memref<64x384xf32, #tpu.memory_space<vmem>>, vector<8x384xf32>
    %c0_18 = arith.constant 0 : index
    %c0_19 = arith.constant 0 : index
    %45 = vector.load %arg3[%c0_18, %c0_19] : memref<128x384xf32, #tpu.memory_space<vmem>>, vector<128x384xf32>
    %cst_20 = arith.constant dense<0.000000e+00> : vector<8x384xf32>
    %46 = tpu.matmul %40, %45, %cst_20 {dimension_numbers = #tpu.dot_dimension_numbers<[1], [0], [0], [1], [0, 0, 1, 1], [], []>} : vector<8x128xf32>, vector<128x384xf32>, vector<8x384xf32> -> vector<8x384xf32>
    %47 = vector.extract_strided_slice %44 {offsets = [0, 0], sizes = [8, 128], strides = [1, 1]} : vector<8x384xf32> to vector<8x128xf32>
    %48 = vector.extract_strided_slice %46 {offsets = [0, 0], sizes = [8, 128], strides = [1, 1]} : vector<8x384xf32> to vector<8x128xf32>
    %49 = arith.addf %47, %48 : vector<8x128xf32>
    %50 = arith.negf %49 : vector<8x128xf32>
    %51 = math.exp %50 : vector<8x128xf32>
    %cst_21 = arith.constant 1.000000e+00 : f32
    %52 = vector.broadcast %cst_21 : f32 to vector<8x128xf32>
    %53 = arith.addf %52, %51 : vector<8x128xf32>
    %54 = arith.divf %52, %53 : vector<8x128xf32>
    %55 = vector.extract_strided_slice %44 {offsets = [0, 128], sizes = [8, 128], strides = [1, 1]} : vector<8x384xf32> to vector<8x128xf32>
    %56 = vector.extract_strided_slice %46 {offsets = [0, 128], sizes = [8, 128], strides = [1, 1]} : vector<8x384xf32> to vector<8x128xf32>
    %57 = arith.addf %55, %56 : vector<8x128xf32>
    %58 = arith.negf %57 : vector<8x128xf32>
    %59 = math.exp %58 : vector<8x128xf32>
    %cst_22 = arith.constant 1.000000e+00 : f32
    %60 = vector.broadcast %cst_22 : f32 to vector<8x128xf32>
    %61 = arith.addf %60, %59 : vector<8x128xf32>
    %62 = arith.divf %60, %61 : vector<8x128xf32>
    %63 = vector.extract_strided_slice %44 {offsets = [0, 256], sizes = [8, 128], strides = [1, 1]} : vector<8x384xf32> to vector<8x128xf32>
    %64 = vector.extract_strided_slice %46 {offsets = [0, 256], sizes = [8, 128], strides = [1, 1]} : vector<8x384xf32> to vector<8x128xf32>
    %65 = vector.broadcast %7 : vector<1x128xf32> to vector<8x128xf32>
    %66 = arith.addf %64, %65 : vector<8x128xf32>
    %67 = arith.mulf %54, %66 : vector<8x128xf32>
    %68 = arith.addf %63, %67 : vector<8x128xf32>
    %69 = math.tanh %68 : vector<8x128xf32>
    %70 = arith.subf %40, %69 : vector<8x128xf32>
    %71 = arith.mulf %62, %70 : vector<8x128xf32>
    %72 = arith.addf %69, %71 : vector<8x128xf32>
    %c2_i32 = arith.constant 2 : i32
    %c8_i32_23 = arith.constant 8 : i32
    %73 = arith.muli %c2_i32, %c8_i32_23 : i32
    %74 = tpu.assume_multiple %73, 8 : i32
    %75 = arith.index_cast %74 : i32 to index
    %c0_24 = arith.constant 0 : index
    %76 = vector.load %arg8[%75, %c0_24] : memref<64x384xf32, #tpu.memory_space<vmem>>, vector<8x384xf32>
    %c0_25 = arith.constant 0 : index
    %c0_26 = arith.constant 0 : index
    %77 = vector.load %arg3[%c0_25, %c0_26] : memref<128x384xf32, #tpu.memory_space<vmem>>, vector<128x384xf32>
    %cst_27 = arith.constant dense<0.000000e+00> : vector<8x384xf32>
    %78 = tpu.matmul %72, %77, %cst_27 {dimension_numbers = #tpu.dot_dimension_numbers<[1], [0], [0], [1], [0, 0, 1, 1], [], []>} : vector<8x128xf32>, vector<128x384xf32>, vector<8x384xf32> -> vector<8x384xf32>
    %79 = vector.extract_strided_slice %76 {offsets = [0, 0], sizes = [8, 128], strides = [1, 1]} : vector<8x384xf32> to vector<8x128xf32>
    %80 = vector.extract_strided_slice %78 {offsets = [0, 0], sizes = [8, 128], strides = [1, 1]} : vector<8x384xf32> to vector<8x128xf32>
    %81 = arith.addf %79, %80 : vector<8x128xf32>
    %82 = arith.negf %81 : vector<8x128xf32>
    %83 = math.exp %82 : vector<8x128xf32>
    %cst_28 = arith.constant 1.000000e+00 : f32
    %84 = vector.broadcast %cst_28 : f32 to vector<8x128xf32>
    %85 = arith.addf %84, %83 : vector<8x128xf32>
    %86 = arith.divf %84, %85 : vector<8x128xf32>
    %87 = vector.extract_strided_slice %76 {offsets = [0, 128], sizes = [8, 128], strides = [1, 1]} : vector<8x384xf32> to vector<8x128xf32>
    %88 = vector.extract_strided_slice %78 {offsets = [0, 128], sizes = [8, 128], strides = [1, 1]} : vector<8x384xf32> to vector<8x128xf32>
    %89 = arith.addf %87, %88 : vector<8x128xf32>
    %90 = arith.negf %89 : vector<8x128xf32>
    %91 = math.exp %90 : vector<8x128xf32>
    %cst_29 = arith.constant 1.000000e+00 : f32
    %92 = vector.broadcast %cst_29 : f32 to vector<8x128xf32>
    %93 = arith.addf %92, %91 : vector<8x128xf32>
    %94 = arith.divf %92, %93 : vector<8x128xf32>
    %95 = vector.extract_strided_slice %76 {offsets = [0, 256], sizes = [8, 128], strides = [1, 1]} : vector<8x384xf32> to vector<8x128xf32>
    %96 = vector.extract_strided_slice %78 {offsets = [0, 256], sizes = [8, 128], strides = [1, 1]} : vector<8x384xf32> to vector<8x128xf32>
    %97 = vector.broadcast %7 : vector<1x128xf32> to vector<8x128xf32>
    %98 = arith.addf %96, %97 : vector<8x128xf32>
    %99 = arith.mulf %86, %98 : vector<8x128xf32>
    %100 = arith.addf %95, %99 : vector<8x128xf32>
    %101 = math.tanh %100 : vector<8x128xf32>
    %102 = arith.subf %72, %101 : vector<8x128xf32>
    %103 = arith.mulf %94, %102 : vector<8x128xf32>
    %104 = arith.addf %101, %103 : vector<8x128xf32>
    %c3_i32 = arith.constant 3 : i32
    %c8_i32_30 = arith.constant 8 : i32
    %105 = arith.muli %c3_i32, %c8_i32_30 : i32
    %106 = tpu.assume_multiple %105, 8 : i32
    %107 = arith.index_cast %106 : i32 to index
    %c0_31 = arith.constant 0 : index
    %108 = vector.load %arg8[%107, %c0_31] : memref<64x384xf32, #tpu.memory_space<vmem>>, vector<8x384xf32>
    %c0_32 = arith.constant 0 : index
    %c0_33 = arith.constant 0 : index
    %109 = vector.load %arg3[%c0_32, %c0_33] : memref<128x384xf32, #tpu.memory_space<vmem>>, vector<128x384xf32>
    %cst_34 = arith.constant dense<0.000000e+00> : vector<8x384xf32>
    %110 = tpu.matmul %104, %109, %cst_34 {dimension_numbers = #tpu.dot_dimension_numbers<[1], [0], [0], [1], [0, 0, 1, 1], [], []>} : vector<8x128xf32>, vector<128x384xf32>, vector<8x384xf32> -> vector<8x384xf32>
    %111 = vector.extract_strided_slice %108 {offsets = [0, 0], sizes = [8, 128], strides = [1, 1]} : vector<8x384xf32> to vector<8x128xf32>
    %112 = vector.extract_strided_slice %110 {offsets = [0, 0], sizes = [8, 128], strides = [1, 1]} : vector<8x384xf32> to vector<8x128xf32>
    %113 = arith.addf %111, %112 : vector<8x128xf32>
    %114 = arith.negf %113 : vector<8x128xf32>
    %115 = math.exp %114 : vector<8x128xf32>
    %cst_35 = arith.constant 1.000000e+00 : f32
    %116 = vector.broadcast %cst_35 : f32 to vector<8x128xf32>
    %117 = arith.addf %116, %115 : vector<8x128xf32>
    %118 = arith.divf %116, %117 : vector<8x128xf32>
    %119 = vector.extract_strided_slice %108 {offsets = [0, 128], sizes = [8, 128], strides = [1, 1]} : vector<8x384xf32> to vector<8x128xf32>
    %120 = vector.extract_strided_slice %110 {offsets = [0, 128], sizes = [8, 128], strides = [1, 1]} : vector<8x384xf32> to vector<8x128xf32>
    %121 = arith.addf %119, %120 : vector<8x128xf32>
    %122 = arith.negf %121 : vector<8x128xf32>
    %123 = math.exp %122 : vector<8x128xf32>
    %cst_36 = arith.constant 1.000000e+00 : f32
    %124 = vector.broadcast %cst_36 : f32 to vector<8x128xf32>
    %125 = arith.addf %124, %123 : vector<8x128xf32>
    %126 = arith.divf %124, %125 : vector<8x128xf32>
    %127 = vector.extract_strided_slice %108 {offsets = [0, 256], sizes = [8, 128], strides = [1, 1]} : vector<8x384xf32> to vector<8x128xf32>
    %128 = vector.extract_strided_slice %110 {offsets = [0, 256], sizes = [8, 128], strides = [1, 1]} : vector<8x384xf32> to vector<8x128xf32>
    %129 = vector.broadcast %7 : vector<1x128xf32> to vector<8x128xf32>
    %130 = arith.addf %128, %129 : vector<8x128xf32>
    %131 = arith.mulf %118, %130 : vector<8x128xf32>
    %132 = arith.addf %127, %131 : vector<8x128xf32>
    %133 = math.tanh %132 : vector<8x128xf32>
    %134 = arith.subf %104, %133 : vector<8x128xf32>
    %135 = arith.mulf %126, %134 : vector<8x128xf32>
    %136 = arith.addf %133, %135 : vector<8x128xf32>
    %c4_i32 = arith.constant 4 : i32
    %c8_i32_37 = arith.constant 8 : i32
    %137 = arith.muli %c4_i32, %c8_i32_37 : i32
    %138 = tpu.assume_multiple %137, 8 : i32
    %139 = arith.index_cast %138 : i32 to index
    %c0_38 = arith.constant 0 : index
    %140 = vector.load %arg8[%139, %c0_38] : memref<64x384xf32, #tpu.memory_space<vmem>>, vector<8x384xf32>
    %c0_39 = arith.constant 0 : index
    %c0_40 = arith.constant 0 : index
    %141 = vector.load %arg3[%c0_39, %c0_40] : memref<128x384xf32, #tpu.memory_space<vmem>>, vector<128x384xf32>
    %cst_41 = arith.constant dense<0.000000e+00> : vector<8x384xf32>
    %142 = tpu.matmul %136, %141, %cst_41 {dimension_numbers = #tpu.dot_dimension_numbers<[1], [0], [0], [1], [0, 0, 1, 1], [], []>} : vector<8x128xf32>, vector<128x384xf32>, vector<8x384xf32> -> vector<8x384xf32>
    %143 = vector.extract_strided_slice %140 {offsets = [0, 0], sizes = [8, 128], strides = [1, 1]} : vector<8x384xf32> to vector<8x128xf32>
    %144 = vector.extract_strided_slice %142 {offsets = [0, 0], sizes = [8, 128], strides = [1, 1]} : vector<8x384xf32> to vector<8x128xf32>
    %145 = arith.addf %143, %144 : vector<8x128xf32>
    %146 = arith.negf %145 : vector<8x128xf32>
    %147 = math.exp %146 : vector<8x128xf32>
    %cst_42 = arith.constant 1.000000e+00 : f32
    %148 = vector.broadcast %cst_42 : f32 to vector<8x128xf32>
    %149 = arith.addf %148, %147 : vector<8x128xf32>
    %150 = arith.divf %148, %149 : vector<8x128xf32>
    %151 = vector.extract_strided_slice %140 {offsets = [0, 128], sizes = [8, 128], strides = [1, 1]} : vector<8x384xf32> to vector<8x128xf32>
    %152 = vector.extract_strided_slice %142 {offsets = [0, 128], sizes = [8, 128], strides = [1, 1]} : vector<8x384xf32> to vector<8x128xf32>
    %153 = arith.addf %151, %152 : vector<8x128xf32>
    %154 = arith.negf %153 : vector<8x128xf32>
    %155 = math.exp %154 : vector<8x128xf32>
    %cst_43 = arith.constant 1.000000e+00 : f32
    %156 = vector.broadcast %cst_43 : f32 to vector<8x128xf32>
    %157 = arith.addf %156, %155 : vector<8x128xf32>
    %158 = arith.divf %156, %157 : vector<8x128xf32>
    %159 = vector.extract_strided_slice %140 {offsets = [0, 256], sizes = [8, 128], strides = [1, 1]} : vector<8x384xf32> to vector<8x128xf32>
    %160 = vector.extract_strided_slice %142 {offsets = [0, 256], sizes = [8, 128], strides = [1, 1]} : vector<8x384xf32> to vector<8x128xf32>
    %161 = vector.broadcast %7 : vector<1x128xf32> to vector<8x128xf32>
    %162 = arith.addf %160, %161 : vector<8x128xf32>
    %163 = arith.mulf %150, %162 : vector<8x128xf32>
    %164 = arith.addf %159, %163 : vector<8x128xf32>
    %165 = math.tanh %164 : vector<8x128xf32>
    %166 = arith.subf %136, %165 : vector<8x128xf32>
    %167 = arith.mulf %158, %166 : vector<8x128xf32>
    %168 = arith.addf %165, %167 : vector<8x128xf32>
    %c5_i32 = arith.constant 5 : i32
    %c8_i32_44 = arith.constant 8 : i32
    %169 = arith.muli %c5_i32, %c8_i32_44 : i32
    %170 = tpu.assume_multiple %169, 8 : i32
    %171 = arith.index_cast %170 : i32 to index
    %c0_45 = arith.constant 0 : index
    %172 = vector.load %arg8[%171, %c0_45] : memref<64x384xf32, #tpu.memory_space<vmem>>, vector<8x384xf32>
    %c0_46 = arith.constant 0 : index
    %c0_47 = arith.constant 0 : index
    %173 = vector.load %arg3[%c0_46, %c0_47] : memref<128x384xf32, #tpu.memory_space<vmem>>, vector<128x384xf32>
    %cst_48 = arith.constant dense<0.000000e+00> : vector<8x384xf32>
    %174 = tpu.matmul %168, %173, %cst_48 {dimension_numbers = #tpu.dot_dimension_numbers<[1], [0], [0], [1], [0, 0, 1, 1], [], []>} : vector<8x128xf32>, vector<128x384xf32>, vector<8x384xf32> -> vector<8x384xf32>
    %175 = vector.extract_strided_slice %172 {offsets = [0, 0], sizes = [8, 128], strides = [1, 1]} : vector<8x384xf32> to vector<8x128xf32>
    %176 = vector.extract_strided_slice %174 {offsets = [0, 0], sizes = [8, 128], strides = [1, 1]} : vector<8x384xf32> to vector<8x128xf32>
    %177 = arith.addf %175, %176 : vector<8x128xf32>
    %178 = arith.negf %177 : vector<8x128xf32>
    %179 = math.exp %178 : vector<8x128xf32>
    %cst_49 = arith.constant 1.000000e+00 : f32
    %180 = vector.broadcast %cst_49 : f32 to vector<8x128xf32>
    %181 = arith.addf %180, %179 : vector<8x128xf32>
    %182 = arith.divf %180, %181 : vector<8x128xf32>
    %183 = vector.extract_strided_slice %172 {offsets = [0, 128], sizes = [8, 128], strides = [1, 1]} : vector<8x384xf32> to vector<8x128xf32>
    %184 = vector.extract_strided_slice %174 {offsets = [0, 128], sizes = [8, 128], strides = [1, 1]} : vector<8x384xf32> to vector<8x128xf32>
    %185 = arith.addf %183, %184 : vector<8x128xf32>
    %186 = arith.negf %185 : vector<8x128xf32>
    %187 = math.exp %186 : vector<8x128xf32>
    %cst_50 = arith.constant 1.000000e+00 : f32
    %188 = vector.broadcast %cst_50 : f32 to vector<8x128xf32>
    %189 = arith.addf %188, %187 : vector<8x128xf32>
    %190 = arith.divf %188, %189 : vector<8x128xf32>
    %191 = vector.extract_strided_slice %172 {offsets = [0, 256], sizes = [8, 128], strides = [1, 1]} : vector<8x384xf32> to vector<8x128xf32>
    %192 = vector.extract_strided_slice %174 {offsets = [0, 256], sizes = [8, 128], strides = [1, 1]} : vector<8x384xf32> to vector<8x128xf32>
    %193 = vector.broadcast %7 : vector<1x128xf32> to vector<8x128xf32>
    %194 = arith.addf %192, %193 : vector<8x128xf32>
    %195 = arith.mulf %182, %194 : vector<8x128xf32>
    %196 = arith.addf %191, %195 : vector<8x128xf32>
    %197 = math.tanh %196 : vector<8x128xf32>
    %198 = arith.subf %168, %197 : vector<8x128xf32>
    %199 = arith.mulf %190, %198 : vector<8x128xf32>
    %200 = arith.addf %197, %199 : vector<8x128xf32>
    %c6_i32 = arith.constant 6 : i32
    %c8_i32_51 = arith.constant 8 : i32
    %201 = arith.muli %c6_i32, %c8_i32_51 : i32
    %202 = tpu.assume_multiple %201, 8 : i32
    %203 = arith.index_cast %202 : i32 to index
    %c0_52 = arith.constant 0 : index
    %204 = vector.load %arg8[%203, %c0_52] : memref<64x384xf32, #tpu.memory_space<vmem>>, vector<8x384xf32>
    %c0_53 = arith.constant 0 : index
    %c0_54 = arith.constant 0 : index
    %205 = vector.load %arg3[%c0_53, %c0_54] : memref<128x384xf32, #tpu.memory_space<vmem>>, vector<128x384xf32>
    %cst_55 = arith.constant dense<0.000000e+00> : vector<8x384xf32>
    %206 = tpu.matmul %200, %205, %cst_55 {dimension_numbers = #tpu.dot_dimension_numbers<[1], [0], [0], [1], [0, 0, 1, 1], [], []>} : vector<8x128xf32>, vector<128x384xf32>, vector<8x384xf32> -> vector<8x384xf32>
    %207 = vector.extract_strided_slice %204 {offsets = [0, 0], sizes = [8, 128], strides = [1, 1]} : vector<8x384xf32> to vector<8x128xf32>
    %208 = vector.extract_strided_slice %206 {offsets = [0, 0], sizes = [8, 128], strides = [1, 1]} : vector<8x384xf32> to vector<8x128xf32>
    %209 = arith.addf %207, %208 : vector<8x128xf32>
    %210 = arith.negf %209 : vector<8x128xf32>
    %211 = math.exp %210 : vector<8x128xf32>
    %cst_56 = arith.constant 1.000000e+00 : f32
    %212 = vector.broadcast %cst_56 : f32 to vector<8x128xf32>
    %213 = arith.addf %212, %211 : vector<8x128xf32>
    %214 = arith.divf %212, %213 : vector<8x128xf32>
    %215 = vector.extract_strided_slice %204 {offsets = [0, 128], sizes = [8, 128], strides = [1, 1]} : vector<8x384xf32> to vector<8x128xf32>
    %216 = vector.extract_strided_slice %206 {offsets = [0, 128], sizes = [8, 128], strides = [1, 1]} : vector<8x384xf32> to vector<8x128xf32>
    %217 = arith.addf %215, %216 : vector<8x128xf32>
    %218 = arith.negf %217 : vector<8x128xf32>
    %219 = math.exp %218 : vector<8x128xf32>
    %cst_57 = arith.constant 1.000000e+00 : f32
    %220 = vector.broadcast %cst_57 : f32 to vector<8x128xf32>
    %221 = arith.addf %220, %219 : vector<8x128xf32>
    %222 = arith.divf %220, %221 : vector<8x128xf32>
    %223 = vector.extract_strided_slice %204 {offsets = [0, 256], sizes = [8, 128], strides = [1, 1]} : vector<8x384xf32> to vector<8x128xf32>
    %224 = vector.extract_strided_slice %206 {offsets = [0, 256], sizes = [8, 128], strides = [1, 1]} : vector<8x384xf32> to vector<8x128xf32>
    %225 = vector.broadcast %7 : vector<1x128xf32> to vector<8x128xf32>
    %226 = arith.addf %224, %225 : vector<8x128xf32>
    %227 = arith.mulf %214, %226 : vector<8x128xf32>
    %228 = arith.addf %223, %227 : vector<8x128xf32>
    %229 = math.tanh %228 : vector<8x128xf32>
    %230 = arith.subf %200, %229 : vector<8x128xf32>
    %231 = arith.mulf %222, %230 : vector<8x128xf32>
    %232 = arith.addf %229, %231 : vector<8x128xf32>
    %c7_i32 = arith.constant 7 : i32
    %c8_i32_58 = arith.constant 8 : i32
    %233 = arith.muli %c7_i32, %c8_i32_58 : i32
    %234 = tpu.assume_multiple %233, 8 : i32
    %235 = arith.index_cast %234 : i32 to index
    %c0_59 = arith.constant 0 : index
    %236 = vector.load %arg8[%235, %c0_59] : memref<64x384xf32, #tpu.memory_space<vmem>>, vector<8x384xf32>
    %c0_60 = arith.constant 0 : index
    %c0_61 = arith.constant 0 : index
    %237 = vector.load %arg3[%c0_60, %c0_61] : memref<128x384xf32, #tpu.memory_space<vmem>>, vector<128x384xf32>
    %cst_62 = arith.constant dense<0.000000e+00> : vector<8x384xf32>
    %238 = tpu.matmul %232, %237, %cst_62 {dimension_numbers = #tpu.dot_dimension_numbers<[1], [0], [0], [1], [0, 0, 1, 1], [], []>} : vector<8x128xf32>, vector<128x384xf32>, vector<8x384xf32> -> vector<8x384xf32>
    %239 = vector.extract_strided_slice %236 {offsets = [0, 0], sizes = [8, 128], strides = [1, 1]} : vector<8x384xf32> to vector<8x128xf32>
    %240 = vector.extract_strided_slice %238 {offsets = [0, 0], sizes = [8, 128], strides = [1, 1]} : vector<8x384xf32> to vector<8x128xf32>
    %241 = arith.addf %239, %240 : vector<8x128xf32>
    %242 = arith.negf %241 : vector<8x128xf32>
    %243 = math.exp %242 : vector<8x128xf32>
    %cst_63 = arith.constant 1.000000e+00 : f32
    %244 = vector.broadcast %cst_63 : f32 to vector<8x128xf32>
    %245 = arith.addf %244, %243 : vector<8x128xf32>
    %246 = arith.divf %244, %245 : vector<8x128xf32>
    %247 = vector.extract_strided_slice %236 {offsets = [0, 128], sizes = [8, 128], strides = [1, 1]} : vector<8x384xf32> to vector<8x128xf32>
    %248 = vector.extract_strided_slice %238 {offsets = [0, 128], sizes = [8, 128], strides = [1, 1]} : vector<8x384xf32> to vector<8x128xf32>
    %249 = arith.addf %247, %248 : vector<8x128xf32>
    %250 = arith.negf %249 : vector<8x128xf32>
    %251 = math.exp %250 : vector<8x128xf32>
    %cst_64 = arith.constant 1.000000e+00 : f32
    %252 = vector.broadcast %cst_64 : f32 to vector<8x128xf32>
    %253 = arith.addf %252, %251 : vector<8x128xf32>
    %254 = arith.divf %252, %253 : vector<8x128xf32>
    %255 = vector.extract_strided_slice %236 {offsets = [0, 256], sizes = [8, 128], strides = [1, 1]} : vector<8x384xf32> to vector<8x128xf32>
    %256 = vector.extract_strided_slice %238 {offsets = [0, 256], sizes = [8, 128], strides = [1, 1]} : vector<8x384xf32> to vector<8x128xf32>
    %257 = vector.broadcast %7 : vector<1x128xf32> to vector<8x128xf32>
    %258 = arith.addf %256, %257 : vector<8x128xf32>
    %259 = arith.mulf %246, %258 : vector<8x128xf32>
    %260 = arith.addf %255, %259 : vector<8x128xf32>
    %261 = math.tanh %260 : vector<8x128xf32>
    %262 = arith.subf %232, %261 : vector<8x128xf32>
    %263 = arith.mulf %254, %262 : vector<8x128xf32>
    %264 = arith.addf %261, %263 : vector<8x128xf32>
    %c8_i32_65 = arith.constant 8 : i32
    %c0_66 = arith.constant 0 : index
    %c0_67 = arith.constant 0 : index
    %265 = vector.load %arg5[%c0_66, %c0_67] : memref<128x128xf32, #tpu.memory_space<vmem>>, vector<128x128xf32>
    %cst_68 = arith.constant dense<0.000000e+00> : vector<8x128xf32>
    %266 = tpu.matmul %264, %265, %cst_68 {dimension_numbers = #tpu.dot_dimension_numbers<[1], [0], [0], [1], [0, 0, 1, 1], [], []>} : vector<8x128xf32>, vector<128x128xf32>, vector<8x128xf32> -> vector<8x128xf32>
    %c0_69 = arith.constant 0 : index
    %c0_70 = arith.constant 0 : index
    %267 = vector.load %arg6[%c0_69, %c0_70] : memref<1x128xf32, #tpu.memory_space<vmem>>, vector<1x128xf32>
    %268 = vector.broadcast %267 : vector<1x128xf32> to vector<8x128xf32>
    %269 = arith.addf %266, %268 : vector<8x128xf32>
    %c0_71 = arith.constant 0 : index
    %c0_72 = arith.constant 0 : index
    %270 = vector.load %arg7[%c0_71, %c0_72] : memref<8x128xf32, #tpu.memory_space<vmem>>, vector<8x128xf32>
    tpu.vector_store %arg7[%c0_71, %c0_72], %269 {strides = array<i32>} : memref<8x128xf32, #tpu.memory_space<vmem>>, vector<8x128xf32>,
    return
  }
}

</mosaic_0001>

<llo_original>
// kernel: gru_linear_forward.1
$region0: #{gru_linear_forward.1}
  #allocation0 [shape = 'u32[]', space=smem, size = 0x4, offset = 0x4, fixed_abs, tag = 'smem constant byte address 0x4 - core index']
  #allocation1 [shape = 'u32[144,128]{1,0:T(1,128)}', space=vmem, size = 0x12000, scoped, tag = 'internal scratch']
  #allocation2 [shape = 'f32[64,384]{1,0:T(8,128)}', space=vmem, size = 0x18000, scoped, tag = 'scratch operand']
  %s0 = inlined_call_operand.vmem [shape: f32[64,4], index: 0, kind: input, shape index: {}]
  %s1 = inlined_call_operand.vmem [shape: f32[4,384], index: 1, kind: input, shape index: {}]
  %s2 = inlined_call_operand.vmem [shape: f32[1,384], index: 2, kind: input, shape index: {}]
  %s3 = inlined_call_operand.hbm [shape: f32[128,384], index: 3, kind: input, shape index: {}]
  %s4 = inlined_call_operand.vmem [shape: f32[1,128], index: 4, kind: input, shape index: {}]
  %s5 = inlined_call_operand.hbm [shape: f32[128,128], index: 5, kind: input, shape index: {}]
  %s6 = inlined_call_operand.vmem [shape: f32[1,128], index: 6, kind: input, shape index: {}]
  %s7 = inlined_call_operand.vmem [shape: f32[8,128], index: 7, kind: output, shape index: {}]
  %s8 = sld [smem:[#allocation0]]
  $region46: #{gru_linear_forward.1} parent=0
    _
  %s10 = ssub.s32 1, %s8
  %s11 = scalar_select 0, %s10, %s8
  $region1: #{gru_linear_forward.1} parent=0
    #allocation3 [shape = 'u8[196608]{0}', space=vmem, size = 0x30000, scoped, tag = 'input window, operand 3, single buffered']
    #allocation4 [shape = 's32[1]{0}', space=sflag, size = 0x4, scoped, tag = 'scoped memory for gru_linear_forward.1']
    #allocation5 [shape = 'u8[65536]{0}', space=vmem, size = 0x10000, scoped, tag = 'input window, operand 5, single buffered']
    #allocation6 [shape = 's32[1]{0}', space=sflag, size = 0x4, scoped, tag = 'scoped memory for gru_linear_forward.1']
    %12 = vsyncpa [#allocation4], 0
    %13 = vsyncpa [#allocation6], 0
    // Predicated region
    $region2: #{gru_linear_forward.1} parent=1 // pred_check
      _
    $region3: #{gru_linear_forward.1} parent=1 // pred_check_branch
      %15 = sbr.rel (0) target = $region5
    $region4: #{gru_linear_forward.1} parent=1 // pred_region
      _
    $region5: #{gru_linear_forward.1} parent=1 // pred_fallthru
      _
    // Predicated region
    $region6: #{gru_linear_forward.1} parent=1 // pred_check
      _
    $region7: #{gru_linear_forward.1} parent=1 // pred_check_branch
      %17 = sbr.rel (0) target = $region9
    $region8: #{gru_linear_forward.1} parent=1 // pred_region
      _
    $region9: #{gru_linear_forward.1} parent=1 // pred_fallthru
      _
    // Predicated region
    $region10: #{gru_linear_forward.1} parent=1 // pred_check
      _
    $region11: #{gru_linear_forward.1} parent=1 // pred_check_branch
      %19 = sbr.rel (0) target = $region13
    $region12: #{gru_linear_forward.1} parent=1 // pred_region
      _
    $region13: #{gru_linear_forward.1} parent=1 // pred_fallthru
      _
    // Predicated region
    $region14: #{gru_linear_forward.1} parent=1 // pred_check
      _
    $region15: #{gru_linear_forward.1} parent=1 // pred_check_branch
      %21 = sbr.rel (0) target = $region17
    $region16: #{gru_linear_forward.1} parent=1 // pred_region
      %s23 = ssub.s32 6144, 6144
      %24 = vsyncadd [#allocation4], %s23
      %s25 = sshll.u32 [#allocation3], 4
      %s26 = int_to_ptr.vmem [resolvable:$true] %s25
      %31 = dma.hbm_to_vmem [thread:$0]  %s3, 6144, %s26, [#allocation4], 384, 384, 24
    $region17: #{gru_linear_forward.1} parent=1 // pred_fallthru
      _
    // Predicated region
    $region18: #{gru_linear_forward.1} parent=1 // pred_check
      _
    $region19: #{gru_linear_forward.1} parent=1 // pred_check_branch
      %33 = sbr.rel (0) target = $region21
    $region20: #{gru_linear_forward.1} parent=1 // pred_region
      _
    $region21: #{gru_linear_forward.1} parent=1 // pred_fallthru
      _
    // Predicated region
    $region22: #{gru_linear_forward.1} parent=1 // pred_check
      _
    $region23: #{gru_linear_forward.1} parent=1 // pred_check_branch
      %35 = sbr.rel (0) target = $region25
    $region24: #{gru_linear_forward.1} parent=1 // pred_region
      %s37 = ssub.s32 2048, 2048
      %38 = vsyncadd [#allocation6], %s37
      %s39 = sshll.u32 [#allocation5], 4
      %s40 = int_to_ptr.vmem [resolvable:$true] %s39
      %45 = dma.hbm_to_vmem [thread:$0]  %s5, 2048, %s40, [#allocation6], 128, 128, 8
    $region25: #{gru_linear_forward.1} parent=1 // pred_fallthru
      _
    // Predicated region
    $region26: #{gru_linear_forward.1} parent=1 // pred_check
      _
    $region27: #{gru_linear_forward.1} parent=1 // pred_check_branch
      %47 = sbr.rel (0) target = $region29
    $region28: #{gru_linear_forward.1} parent=1 // pred_region
      _
    $region29: #{gru_linear_forward.1} parent=1 // pred_fallthru
      _
    // Predicated region
    $region30: #{gru_linear_forward.1} parent=1 // pred_check
      _
    $region31: #{gru_linear_forward.1} parent=1 // pred_check_branch
      %49 = sbr.rel (0) target = $region33
    $region32: #{gru_linear_forward.1} parent=1 // pred_region
      %50 = dma.done [#allocation4], 6144
    $region33: #{gru_linear_forward.1} parent=1 // pred_fallthru
      _
    // Predicated region
    $region34: #{gru_linear_forward.1} parent=1 // pred_check
      _
    $region35: #{gru_linear_forward.1} parent=1 // pred_check_branch
      %52 = sbr.rel (0) target = $region37
    $region36: #{gru_linear_forward.1} parent=1 // pred_region
      %53 = dma.done [#allocation6], 2048
    $region37: #{gru_linear_forward.1} parent=1 // pred_fallthru
      _
    %v54 = vld [vmem:[%s0] sm:$0xff]
    %v55 = vld [vmem:[%s0 + $0x8] sm:$0xff]
    %v56 = vld [vmem:[%s0 + $0x10] sm:$0xff]
    %v57 = vld [vmem:[%s0 + $0x18] sm:$0xff]
    %v58 = vld [vmem:[%s0 + $0x20] sm:$0xff]
    %v59 = vld [vmem:[%s0 + $0x28] sm:$0xff]
    %v60 = vld [vmem:[%s0 + $0x30] sm:$0xff]
    %v61 = vld [vmem:[%s0 + $0x38] sm:$0xff]
    %v62 = vld [vmem:[%s1] sm:$0xff]
    %v63 = vld [vmem:[%s1 + $0x8] sm:$0xf]
    %v64 = vld [vmem:[%s2] sm:$0x7]
    %v66 = vlaneseq
    %v67 = vshrl.u32 %v66, 7
    %v68 = vsub.s32 0, %v67
    %v69 = vrot.slane %v64, %v68
    %v70 = vlaneseq
    %v71 = vshrl.u32 %v70, 7
    %v72 = vsub.s32 1, %v71
    %v73 = vrot.slane %v64, %v72
    %v74 = vlaneseq
    %v75 = vshrl.u32 %v74, 7
    %v76 = vsub.s32 2, %v75
    %v77 = vrot.slane %v64, %v76
    %v83 = vcombine.high %v62, %v62
    %vm84 = vcmask 31744
    %v86 = vsel %vm84, %v54, 0
    %v89 = vsel %vm84, %v55, 0
    %v92 = vsel %vm84, %v56, 0
    %v95 = vsel %vm84, %v57, 0
    %v98 = vsel %vm84, %v58, 0
    %v101 = vsel %vm84, %v59, 0
    %v104 = vsel %vm84, %v60, 0
    %v107 = vsel %vm84, %v61, 0
    %vm109 = vcmask 1043456
    %v110 = vsel %vm109, %v62, 0
    %v112 = vsel %vm109, %v83, 0
    %v114 = vsel %vm109, %v63, 0
    %116 = vmatprep.subr.mxu0 %v112
    %117 = vmatpush1.msra.mxu0 %v110
    %118 = vmatprep.subr.mxu0 0.0
    %119 = vmatpush1.msra.mxu0 0.0
    %120 = vmatprep.subr.mxu0 0.0
    %121 = vmatpush1.msra.mxu0 0.0
    %122 = vmatprep.subr.mxu0 0.0
    %123 = vmatpush1.msra.mxu0 0.0
    %124 = vmatprep.subr.mxu0 0.0
    %125 = vmatpush1.msra.mxu0 0.0
    %126 = vmatprep.subr.mxu0 0.0
    %127 = vmatpush1.msra.mxu0 0.0
    %128 = vmatprep.subr.mxu0 0.0
    %129 = vmatpush1.msra.mxu0 0.0
    %130 = vmatprep.subr.mxu0 0.0
    %131 = vmatpush1.msra.mxu0 0.0
    %132 = vmatprep.subr.mxu0 0.0
    %133 = vmatpush1.msra.mxu0 0.0
    %134 = vmatprep.subr.mxu0 0.0
    %135 = vmatpush1.msra.mxu0 0.0
    %136 = vmatprep.subr.mxu0 0.0
    %137 = vmatpush1.msra.mxu0 0.0
    %138 = vmatprep.subr.mxu0 0.0
    %139 = vmatpush1.msra.mxu0 0.0
    %140 = vmatprep.subr.mxu0 0.0
    %141 = vmatpush1.msra.mxu0 0.0
    %142 = vmatprep.subr.mxu0 0.0
    %143 = vmatpush1.msra.mxu0 0.0
    %144 = vmatprep.subr.mxu0 0.0
    %145 = vmatpush1.msra.mxu0 0.0
    %146 = vmatprep.subr.mxu0 0.0
    %147 = vmatpush1.msra.mxu0 0.0
    %148 = vmatprep.subr.mxu0 0.0
    %149 = vmatpush1.msra.mxu0 0.0
    %150 = vmatprep.subr.mxu0 0.0
    %151 = vmatpush1.msra.mxu0 0.0
    %152 = vmatprep.subr.mxu0 0.0
    %153 = vmatpush1.msra.mxu0 0.0
    %154 = vmatprep.subr.mxu0 0.0
    %155 = vmatpush1.msra.mxu0 0.0
    %156 = vmatprep.subr.mxu0 0.0
    %157 = vmatpush1.msra.mxu0 0.0
    %158 = vmatprep.subr.mxu0 0.0
    %159 = vmatpush1.msra.mxu0 0.0
    %160 = vmatprep.subr.mxu0 0.0
    %161 = vmatpush1.msra.mxu0 0.0
    %162 = vmatprep.subr.mxu0 0.0
    %163 = vmatpush1.msra.mxu0 0.0
    %164 = vmatprep.subr.mxu0 0.0
    %165 = vmatpush1.msra.mxu0 0.0
    %166 = vmatprep.subr.mxu0 0.0
    %167 = vmatpush1.msra.mxu0 0.0
    %168 = vmatprep.subr.mxu0 0.0
    %169 = vmatpush1.msra.mxu0 0.0
    %170 = vmatprep.subr.mxu0 0.0
    %171 = vmatpush1.msra.mxu0 0.0
    %172 = vmatprep.subr.mxu0 0.0
    %173 = vmatpush1.msra.mxu0 0.0
    %174 = vmatprep.subr.mxu0 0.0
    %175 = vmatpush1.msra.mxu0 0.0
    %176 = vmatprep.subr.mxu0 0.0
    %177 = vmatpush1.msra.mxu0 0.0
    %178 = vmatprep.subr.mxu0 0.0
    %179 = vmatpush1.msra.mxu0 0.0
    %180 = vmatprep.mubr.f32.mxu0 0.0
    %181 = vmatmul.mubr.f32.gmra.mrb[0].mxu0 %v86
    %v182 = vpop.f32.mrb[0].mxu0
    %v183 = vadd.f32 %v69, %v182
    %v184 = vpop.f32.mrb[0].mxu0
    %v185 = vadd.f32 %v73, %v184
    %186 = vmatprep.mubr.f32.mxu0 0.0
    %187 = vmatmul.mubr.f32.gmra.mrb[0].mxu0 %v89
    %v188 = vpop.f32.mrb[0].mxu0
    %v189 = vadd.f32 %v69, %v188
    %v190 = vpop.f32.mrb[0].mxu0
    %v191 = vadd.f32 %v73, %v190
    %192 = vmatprep.mubr.f32.mxu0 0.0
    %193 = vmatmul.mubr.f32.gmra.mrb[0].mxu0 %v92
    %v194 = vpop.f32.mrb[0].mxu0
    %v195 = vadd.f32 %v69, %v194
    %v196 = vpop.f32.mrb[0].mxu0
    %v197 = vadd.f32 %v73, %v196
    %198 = vmatprep.mubr.f32.mxu0 0.0
    %199 = vmatmul.mubr.f32.gmra.mrb[0].mxu0 %v95
    %v200 = vpop.f32.mrb[0].mxu0
    %v201 = vadd.f32 %v69, %v200
    %v202 = vpop.f32.mrb[0].mxu0
    %v203 = vadd.f32 %v73, %v202
    %204 = vmatprep.mubr.f32.mxu0 0.0
    %205 = vmatmul.mubr.f32.gmra.mrb[0].mxu0 %v98
    %v206 = vpop.f32.mrb[0].mxu0
    %v207 = vadd.f32 %v69, %v206
    %v208 = vpop.f32.mrb[0].mxu0
    %v209 = vadd.f32 %v73, %v208
    %210 = vmatprep.mubr.f32.mxu0 0.0
    %211 = vmatmul.mubr.f32.gmra.mrb[0].mxu0 %v101
    %v212 = vpop.f32.mrb[0].mxu0
    %v213 = vadd.f32 %v69, %v212
    %v214 = vpop.f32.mrb[0].mxu0
    %v215 = vadd.f32 %v73, %v214
    %216 = vmatprep.mubr.f32.mxu0 0.0
    %217 = vmatmul.mubr.f32.gmra.mrb[0].mxu0 %v104
    %v218 = vpop.f32.mrb[0].mxu0
    %v219 = vadd.f32 %v69, %v218
    %v220 = vpop.f32.mrb[0].mxu0
    %v221 = vadd.f32 %v73, %v220
    %222 = vmatprep.mubr.f32.mxu0 0.0
    %223 = vmatmul.mubr.f32.gmra.mrb[0].mxu0 %v107
    %v224 = vpop.f32.mrb[0].mxu0
    %v225 = vadd.f32 %v69, %v224
    %v226 = vpop.f32.mrb[0].mxu0
    %v227 = vadd.f32 %v73, %v226
    %228 = vdwg.mxu0
    %229 = vmatprep.subr.mxu0 0.0
    %230 = vmatpush1.msra.mxu0 %v114
    %231 = vmatprep.subr.mxu0 0.0
    %232 = vmatpush1.msra.mxu0 0.0
    %233 = vmatprep.subr.mxu0 0.0
    %234 = vmatpush1.msra.mxu0 0.0
    %235 = vmatprep.subr.mxu0 0.0
    %236 = vmatpush1.msra.mxu0 0.0
    %237 = vmatprep.subr.mxu0 0.0
    %238 = vmatpush1.msra.mxu0 0.0
    %239 = vmatprep.subr.mxu0 0.0
    %240 = vmatpush1.msra.mxu0 0.0
    %241 = vmatprep.subr.mxu0 0.0
    %242 = vmatpush1.msra.mxu0 0.0
    %243 = vmatprep.subr.mxu0 0.0
    %244 = vmatpush1.msra.mxu0 0.0
    %245 = vmatprep.subr.mxu0 0.0
    %246 = vmatpush1.msra.mxu0 0.0
    %247 = vmatprep.subr.mxu0 0.0
    %248 = vmatpush1.msra.mxu0 0.0
    %249 = vmatprep.subr.mxu0 0.0
    %250 = vmatpush1.msra.mxu0 0.0
    %251 = vmatprep.subr.mxu0 0.0
    %252 = vmatpush1.msra.mxu0 0.0
    %253 = vmatprep.subr.mxu0 0.0
    %254 = vmatpush1.msra.mxu0 0.0
    %255 = vmatprep.subr.mxu0 0.0
    %256 = vmatpush1.msra.mxu0 0.0
    %257 = vmatprep.subr.mxu0 0.0
    %258 = vmatpush1.msra.mxu0 0.0
    %259 = vmatprep.subr.mxu0 0.0
    %260 = vmatpush1.msra.mxu0 0.0
    %261 = vmatprep.subr.mxu0 0.0
    %262 = vmatpush1.msra.mxu0 0.0
    %263 = vmatprep.subr.mxu0 0.0
    %264 = vmatpush1.msra.mxu0 0.0
    %265 = vmatprep.subr.mxu0 0.0
    %266 = vmatpush1.msra.mxu0 0.0
    %267 = vmatprep.subr.mxu0 0.0
    %268 = vmatpush1.msra.mxu0 0.0
    %269 = vmatprep.subr.mxu0 0.0
    %270 = vmatpush1.msra.mxu0 0.0
    %271 = vmatprep.subr.mxu0 0.0
    %272 = vmatpush1.msra.mxu0 0.0
    %273 = vmatprep.subr.mxu0 0.0
    %274 = vmatpush1.msra.mxu0 0.0
    %275 = vmatprep.subr.mxu0 0.0
    %276 = vmatpush1.msra.mxu0 0.0
    %277 = vmatprep.subr.mxu0 0.0
    %278 = vmatpush1.msra.mxu0 0.0
    %279 = vmatprep.subr.mxu0 0.0
    %280 = vmatpush1.msra.mxu0 0.0
    %281 = vmatprep.subr.mxu0 0.0
    %282 = vmatpush1.msra.mxu0 0.0
    %283 = vmatprep.subr.mxu0 0.0
    %284 = vmatpush1.msra.mxu0 0.0
    %285 = vmatprep.subr.mxu0 0.0
    %286 = vmatpush1.msra.mxu0 0.0
    %287 = vmatprep.subr.mxu0 0.0
    %288 = vmatpush1.msra.mxu0 0.0
    %289 = vmatprep.subr.mxu0 0.0
    %290 = vmatpush1.msra.mxu0 0.0
    %291 = vmatprep.subr.mxu0 0.0
    %292 = vmatpush1.msra.mxu0 0.0
    %293 = vmatprep.mubr.f32.mxu0 0.0
    %294 = vmatmul.mubr.f32.gmra.mrb[0].mxu0 %v86
    %v295 = vpop.f32.mrb[0].mxu0
    %v296 = vadd.f32 %v77, %v295
    %v297 = vpop.f32.mrb[0].mxu0
    %298 = vmatprep.mubr.f32.mxu0 0.0
    %299 = vmatmul.mubr.f32.gmra.mrb[0].mxu0 %v89
    %v300 = vpop.f32.mrb[0].mxu0
    %v301 = vadd.f32 %v77, %v300
    %v302 = vpop.f32.mrb[0].mxu0
    %303 = vmatprep.mubr.f32.mxu0 0.0
    %304 = vmatmul.mubr.f32.gmra.mrb[0].mxu0 %v92
    %v305 = vpop.f32.mrb[0].mxu0
    %v306 = vadd.f32 %v77, %v305
    %v307 = vpop.f32.mrb[0].mxu0
    %308 = vmatprep.mubr.f32.mxu0 0.0
    %309 = vmatmul.mubr.f32.gmra.mrb[0].mxu0 %v95
    %v310 = vpop.f32.mrb[0].mxu0
    %v311 = vadd.f32 %v77, %v310
    %v312 = vpop.f32.mrb[0].mxu0
    %313 = vmatprep.mubr.f32.mxu0 0.0
    %314 = vmatmul.mubr.f32.gmra.mrb[0].mxu0 %v98
    %v315 = vpop.f32.mrb[0].mxu0
    %v316 = vadd.f32 %v77, %v315
    %v317 = vpop.f32.mrb[0].mxu0
    %318 = vmatprep.mubr.f32.mxu0 0.0
    %319 = vmatmul.mubr.f32.gmra.mrb[0].mxu0 %v101
    %v320 = vpop.f32.mrb[0].mxu0
    %v321 = vadd.f32 %v77, %v320
    %v322 = vpop.f32.mrb[0].mxu0
    %323 = vmatprep.mubr.f32.mxu0 0.0
    %324 = vmatmul.mubr.f32.gmra.mrb[0].mxu0 %v104
    %v325 = vpop.f32.mrb[0].mxu0
    %v326 = vadd.f32 %v77, %v325
    %v327 = vpop.f32.mrb[0].mxu0
    %328 = vmatprep.mubr.f32.mxu0 0.0
    %329 = vmatmul.mubr.f32.gmra.mrb[0].mxu0 %v107
    %v330 = vpop.f32.mrb[0].mxu0
    %v331 = vadd.f32 %v77, %v330
    %v332 = vpop.f32.mrb[0].mxu0
    %333 = vdwg.mxu0
    %334 = vst [vmem:[#allocation2] sm:$0xff] %v183
    %335 = vst [vmem:[#allocation2 + $0x8] sm:$0xff] %v185
    %336 = vst [vmem:[#allocation2 + $0x10] sm:$0xff] %v296
    %337 = vst [vmem:[#allocation2 + $0x18] sm:$0xff] %v189
    %338 = vst [vmem:[#allocation2 + $0x20] sm:$0xff] %v191
    %339 = vst [vmem:[#allocation2 + $0x28] sm:$0xff] %v301
    %340 = vst [vmem:[#allocation2 + $0x30] sm:$0xff] %v195
    %341 = vst [vmem:[#allocation2 + $0x38] sm:$0xff] %v197
    %342 = vst [vmem:[#allocation2 + $0x40] sm:$0xff] %v306
    %343 = vst [vmem:[#allocation2 + $0x48] sm:$0xff] %v201
    %344 = vst [vmem:[#allocation2 + $0x50] sm:$0xff] %v203
    %345 = vst [vmem:[#allocation2 + $0x58] sm:$0xff] %v311
    %346 = vst [vmem:[#allocation2 + $0x60] sm:$0xff] %v207
    %347 = vst [vmem:[#allocation2 + $0x68] sm:$0xff] %v209
    %348 = vst [vmem:[#allocation2 + $0x70] sm:$0xff] %v316
    %349 = vst [vmem:[#allocation2 + $0x78] sm:$0xff] %v213
    %350 = vst [vmem:[#allocation2 + $0x80] sm:$0xff] %v215
    %351 = vst [vmem:[#allocation2 + $0x88] sm:$0xff] %v321
    %352 = vst [vmem:[#allocation2 + $0x90] sm:$0xff] %v219
    %353 = vst [vmem:[#allocation2 + $0x98] sm:$0xff] %v221
    %354 = vst [vmem:[#allocation2 + $0xa0] sm:$0xff] %v326
    %355 = vst [vmem:[#allocation2 + $0xa8] sm:$0xff] %v225
    %356 = vst [vmem:[#allocation2 + $0xb0] sm:$0xff] %v227
    %357 = vst [vmem:[#allocation2 + $0xb8] sm:$0xff] %v331
    %v358 = vld [vmem:[%s4] sm:$0x1]
    %s359 = smul.u32 0, 3
    %s360 = smul.addr %s359, 8
    %s361 = scalar_lea.vmem [#allocation2], %s360
    %v362 = vld [vmem:[%s361] sm:$0xff]
    %v363 = vld [vmem:[%s361 + $0x8] sm:$0xff]
    %v364 = vld [vmem:[%s361 + $0x10] sm:$0xff]
    %v365 = vld [vmem:[#allocation3] sm:$0xff]
    %v366 = vld [vmem:[#allocation3 + $0x8] sm:$0xff]
    %v367 = vld [vmem:[#allocation3 + $0x10] sm:$0xff]
    %v368 = vld [vmem:[#allocation3 + $0x18] sm:$0xff]
    %v369 = vld [vmem:[#allocation3 + $0x20] sm:$0xff]
    %v370 = vld [vmem:[#allocation3 + $0x28] sm:$0xff]
    %v371 = vld [vmem:[#allocation3 + $0x30] sm:$0xff]
    %v372 = vld [vmem:[#allocation3 + $0x38] sm:$0xff]
    %v373 = vld [vmem:[#allocation3 + $0x40] sm:$0xff]
    %v374 = vld [vmem:[#allocation3 + $0x48] sm:$0xff]
    %v375 = vld [vmem:[#allocation3 + $0x50] sm:$0xff]
    %v376 = vld [vmem:[#allocation3 + $0x58] sm:$0xff]
    %v377 = vld [vmem:[#allocation3 + $0x60] sm:$0xff]
    %v378 = vld [vmem:[#allocation3 + $0x68] sm:$0xff]
    %v379 = vld [vmem:[#allocation3 + $0x70] sm:$0xff]
    %v380 = vld [vmem:[#allocation3 + $0x78] sm:$0xff]
    %v381 = vld [vmem:[#allocation3 + $0x80] sm:$0xff]
    %v382 = vld [vmem:[#allocation3 + $0x88] sm:$0xff]
    %v383 = vld [vmem:[#allocation3 + $0x90] sm:$0xff]
    %v384 = vld [vmem:[#allocation3 + $0x98] sm:$0xff]
    %v385 = vld [vmem:[#allocation3 + $0xa0] sm:$0xff]
    %v386 = vld [vmem:[#allocation3 + $0xa8] sm:$0xff]
    %v387 = vld [vmem:[#allocation3 + $0xb0] sm:$0xff]
    %v388 = vld [vmem:[#allocation3 + $0xb8] sm:$0xff]
    %v389 = vld [vmem:[#allocation3 + $0xc0] sm:$0xff]
    %v390 = vld [vmem:[#allocation3 + $0xc8] sm:$0xff]
    %v391 = vld [vmem:[#allocation3 + $0xd0] sm:$0xff]
    %v392 = vld [vmem:[#allocation3 + $0xd8] sm:$0xff]
    %v393 = vld [vmem:[#allocation3 + $0xe0] sm:$0xff]
    %v394 = vld [vmem:[#allocation3 + $0xe8] sm:$0xff]
    %v395 = vld [vmem:[#allocation3 + $0xf0] sm:$0xff]
    %v396 = vld [vmem:[#allocation3 + $0xf8] sm:$0xff]
    %v397 = vld [vmem:[#allocation3 + $0x100] sm:$0xff]
    %v398 = vld [vmem:[#allocation3 + $0x108] sm:$0xff]
    %v399 = vld [vmem:[#allocation3 + $0x110] sm:$0xff]
    %v400 = vld [vmem:[#allocation3 + $0x118] sm:$0xff]
    %v401 = vld [vmem:[#allocation3 + $0x120] sm:$0xff]
    %v402 = vld [vmem:[#allocation3 + $0x128] sm:$0xff]
    %v403 = vld [vmem:[#allocation3 + $0x130] sm:$0xff]
    %v404 = vld [vmem:[#allocation3 + $0x138] sm:$0xff]
    %v405 = vld [vmem:[#allocation3 + $0x140] sm:$0xff]
    %v406 = vld [vmem:[#allocation3 + $0x148] sm:$0xff]
    %v407 = vld [vmem:[#allocation3 + $0x150] sm:$0xff]
    %v408 = vld [vmem:[#allocation3 + $0x158] sm:$0xff]
    %v409 = vld [vmem:[#allocation3 + $0x160] sm:$0xff]
    %v410 = vld [vmem:[#allocation3 + $0x168] sm:$0xff]
    %v411 = vld [vmem:[#allocation3 + $0x170] sm:$0xff]
    %v412 = vld [vmem:[#allocation3 + $0x178] sm:$0xff]
    %413 = vmatprep.subr.mxu0 %v366
    %414 = vmatpush1.msra.mxu0 %v365
    %415 = vmatprep.subr.mxu0 %v369
    %416 = vmatpush1.msra.mxu0 %v368
    %417 = vmatprep.subr.mxu0 %v372
    %418 = vmatpush1.msra.mxu0 %v371
    %419 = vmatprep.subr.mxu0 %v375
    %420 = vmatpush1.msra.mxu0 %v374
    %421 = vmatprep.subr.mxu0 %v378
    %422 = vmatpush1.msra.mxu0 %v377
    %423 = vmatprep.subr.mxu0 %v381
    %424 = vmatpush1.msra.mxu0 %v380
    %425 = vmatprep.subr.mxu0 %v384
    %426 = vmatpush1.msra.mxu0 %v383
    %427 = vmatprep.subr.mxu0 %v387
    %428 = vmatpush1.msra.mxu0 %v386
    %429 = vmatprep.subr.mxu0 %v390
    %430 = vmatpush1.msra.mxu0 %v389
    %431 = vmatprep.subr.mxu0 %v393
    %432 = vmatpush1.msra.mxu0 %v392
    %433 = vmatprep.subr.mxu0 %v396
    %434 = vmatpush1.msra.mxu0 %v395
    %435 = vmatprep.subr.mxu0 %v399
    %436 = vmatpush1.msra.mxu0 %v398
    %437 = vmatprep.subr.mxu0 %v402
    %438 = vmatpush1.msra.mxu0 %v401
    %439 = vmatprep.subr.mxu0 %v405
    %440 = vmatpush1.msra.mxu0 %v404
    %441 = vmatprep.subr.mxu0 %v408
    %442 = vmatpush1.msra.mxu0 %v407
    %443 = vmatprep.subr.mxu0 %v411
    %444 = vmatpush1.msra.mxu0 %v410
    %445 = vmatprep.subr.mxu0 0.0
    %446 = vmatpush1.msra.mxu0 0.0
    %447 = vmatprep.subr.mxu0 0.0
    %448 = vmatpush1.msra.mxu0 0.0
    %449 = vmatprep.subr.mxu0 0.0
    %450 = vmatpush1.msra.mxu0 0.0
    %451 = vmatprep.subr.mxu0 0.0
    %452 = vmatpush1.msra.mxu0 0.0
    %453 = vmatprep.subr.mxu0 0.0
    %454 = vmatpush1.msra.mxu0 0.0
    %455 = vmatprep.subr.mxu0 0.0
    %456 = vmatpush1.msra.mxu0 0.0
    %457 = vmatprep.subr.mxu0 0.0
    %458 = vmatpush1.msra.mxu0 0.0
    %459 = vmatprep.subr.mxu0 0.0
    %460 = vmatpush1.msra.mxu0 0.0
    %461 = vmatprep.subr.mxu0 0.0
    %462 = vmatpush1.msra.mxu0 0.0
    %463 = vmatprep.subr.mxu0 0.0
    %464 = vmatpush1.msra.mxu0 0.0
    %465 = vmatprep.subr.mxu0 0.0
    %466 = vmatpush1.msra.mxu0 0.0
    %467 = vmatprep.subr.mxu0 0.0
    %468 = vmatpush1.msra.mxu0 0.0
    %469 = vmatprep.subr.mxu0 0.0
    %470 = vmatpush1.msra.mxu0 0.0
    %471 = vmatprep.subr.mxu0 0.0
    %472 = vmatpush1.msra.mxu0 0.0
    %473 = vmatprep.subr.mxu0 0.0
    %474 = vmatpush1.msra.mxu0 0.0
    %475 = vmatprep.subr.mxu0 0.0
    %476 = vmatpush1.msra.mxu0 0.0
    %477 = vmatprep.mubr.f32.mxu0 0.0
    %478 = vmatmul.mubr.f32.gmra.mrb[0].mxu0 0.0
    %v479 = vpop.f32.mrb[0].mxu0
    %v480 = vadd.f32 0.0, %v479
    %v481 = vpop.f32.mrb[0].mxu0
    %v482 = vadd.f32 0.0, %v481
    %483 = vdwg.mxu0
    %484 = vmatprep.subr.mxu0 0.0
    %485 = vmatpush1.msra.mxu0 %v367
    %486 = vmatprep.subr.mxu0 0.0
    %487 = vmatpush1.msra.mxu0 %v370
    %488 = vmatprep.subr.mxu0 0.0
    %489 = vmatpush1.msra.mxu0 %v373
    %490 = vmatprep.subr.mxu0 0.0
    %491 = vmatpush1.msra.mxu0 %v376
    %492 = vmatprep.subr.mxu0 0.0
    %493 = vmatpush1.msra.mxu0 %v379
    %494 = vmatprep.subr.mxu0 0.0
    %495 = vmatpush1.msra.mxu0 %v382
    %496 = vmatprep.subr.mxu0 0.0
    %497 = vmatpush1.msra.mxu0 %v385
    %498 = vmatprep.subr.mxu0 0.0
    %499 = vmatpush1.msra.mxu0 %v388
    %500 = vmatprep.subr.mxu0 0.0
    %501 = vmatpush1.msra.mxu0 %v391
    %502 = vmatprep.subr.mxu0 0.0
    %503 = vmatpush1.msra.mxu0 %v394
    %504 = vmatprep.subr.mxu0 0.0
    %505 = vmatpush1.msra.mxu0 %v397
    %506 = vmatprep.subr.mxu0 0.0
    %507 = vmatpush1.msra.mxu0 %v400
    %508 = vmatprep.subr.mxu0 0.0
    %509 = vmatpush1.msra.mxu0 %v403
    %510 = vmatprep.subr.mxu0 0.0
    %511 = vmatpush1.msra.mxu0 %v406
    %512 = vmatprep.subr.mxu0 0.0
    %513 = vmatpush1.msra.mxu0 %v409
    %514 = vmatprep.subr.mxu0 0.0
    %515 = vmatpush1.msra.mxu0 %v412
    %516 = vmatprep.subr.mxu0 0.0
    %517 = vmatpush1.msra.mxu0 0.0
    %518 = vmatprep.subr.mxu0 0.0
    %519 = vmatpush1.msra.mxu0 0.0
    %520 = vmatprep.subr.mxu0 0.0
    %521 = vmatpush1.msra.mxu0 0.0
    %522 = vmatprep.subr.mxu0 0.0
    %523 = vmatpush1.msra.mxu0 0.0
    %524 = vmatprep.subr.mxu0 0.0
    %525 = vmatpush1.msra.mxu0 0.0
    %526 = vmatprep.subr.mxu0 0.0
    %527 = vmatpush1.msra.mxu0 0.0
    %528 = vmatprep.subr.mxu0 0.0
    %529 = vmatpush1.msra.mxu0 0.0
    %530 = vmatprep.subr.mxu0 0.0
    %531 = vmatpush1.msra.mxu0 0.0
    %532 = vmatprep.subr.mxu0 0.0
    %533 = vmatpush1.msra.mxu0 0.0
    %534 = vmatprep.subr.mxu0 0.0
    %535 = vmatpush1.msra.mxu0 0.0
    %536 = vmatprep.subr.mxu0 0.0
    %537 = vmatpush1.msra.mxu0 0.0
    %538 = vmatprep.subr.mxu0 0.0
    %539 = vmatpush1.msra.mxu0 0.0
    %540 = vmatprep.subr.mxu0 0.0
    %541 = vmatpush1.msra.mxu0 0.0
    %542 = vmatprep.subr.mxu0 0.0
    %543 = vmatpush1.msra.mxu0 0.0
    %544 = vmatprep.subr.mxu0 0.0
    %545 = vmatpush1.msra.mxu0 0.0
    %546 = vmatprep.subr.mxu0 0.0
    %547 = vmatpush1.msra.mxu0 0.0
    %548 = vmatprep.mubr.f32.mxu0 0.0
    %549 = vmatmul.mubr.f32.gmra.mrb[0].mxu0 0.0
    %v550 = vpop.f32.mrb[0].mxu0
    %v551 = vadd.f32 0.0, %v550
    %v552 = vpop.f32.mrb[0].mxu0
    %553 = vdwg.mxu0
    %v554 = vadd.f32 %v362, %v480
    %v555 = vxor.u32 %v554, 2147483648
    %v556 = vmul.f32 %v555, 1.442695
    %v557 = vpow.pop %v556
    %v558 = vadd.f32 %v557, 1.0
    %v559 = vrcp.pop %v558
    %v560 = vmul.f32 1.0, %v559
    %v561 = vadd.f32 %v363, %v482
    %v562 = vxor.u32 %v561, 2147483648
    %v563 = vmul.f32 %v562, 1.442695
    %v564 = vpow.pop %v563
    %v565 = vadd.f32 %v564, 1.0
    %v566 = vrcp.pop %v565
    %v567 = vmul.f32 1.0, %v566
    %v569 = vlaneseq
    %v570 = vshrl.u32 %v569, 7
    %v571 = vsub.s32 0, %v570
    %v572 = vrot.slane %v358, %v571
    %v574 = vadd.f32 %v551, %v572
    %v575 = vmul.f32 %v560, %v574
    %v576 = vadd.f32 %v364, %v575
    %v577 = vtanh.pop %v576
    %v578 = vsub.f32 0.0, %v577
    %v579 = vmul.f32 %v567, %v578
    %v580 = vadd.f32 %v577, %v579
    %s581 = smul.u32 1, 3
    %s582 = smul.addr %s581, 8
    %s583 = scalar_lea.vmem [#allocation2], %s582
    %v584 = vld [vmem:[%s583] sm:$0xff]
    %v585 = vld [vmem:[%s583 + $0x8] sm:$0xff]
    %v586 = vld [vmem:[%s583 + $0x10] sm:$0xff]
    %587 = vmatprep.subr.mxu0 %v366
    %588 = vmatpush1.msra.mxu0 %v365
    %589 = vmatprep.subr.mxu0 %v369
    %590 = vmatpush1.msra.mxu0 %v368
    %591 = vmatprep.subr.mxu0 %v372
    %592 = vmatpush1.msra.mxu0 %v371
    %593 = vmatprep.subr.mxu0 %v375
    %594 = vmatpush1.msra.mxu0 %v374
    %595 = vmatprep.subr.mxu0 %v378
    %596 = vmatpush1.msra.mxu0 %v377
    %597 = vmatprep.subr.mxu0 %v381
    %598 = vmatpush1.msra.mxu0 %v380
    %599 = vmatprep.subr.mxu0 %v384
    %600 = vmatpush1.msra.mxu0 %v383
    %601 = vmatprep.subr.mxu0 %v387
    %602 = vmatpush1.msra.mxu0 %v386
    %603 = vmatprep.subr.mxu0 %v390
    %604 = vmatpush1.msra.mxu0 %v389
    %605 = vmatprep.subr.mxu0 %v393
    %606 = vmatpush1.msra.mxu0 %v392
    %607 = vmatprep.subr.mxu0 %v396
    %608 = vmatpush1.msra.mxu0 %v395
    %609 = vmatprep.subr.mxu0 %v399
    %610 = vmatpush1.msra.mxu0 %v398
    %611 = vmatprep.subr.mxu0 %v402
    %612 = vmatpush1.msra.mxu0 %v401
    %613 = vmatprep.subr.mxu0 %v405
    %614 = vmatpush1.msra.mxu0 %v404
    %615 = vmatprep.subr.mxu0 %v408
    %616 = vmatpush1.msra.mxu0 %v407
    %617 = vmatprep.subr.mxu0 %v411
    %618 = vmatpush1.msra.mxu0 %v410
    %619 = vmatprep.subr.mxu0 0.0
    %620 = vmatpush1.msra.mxu0 0.0
    %621 = vmatprep.subr.mxu0 0.0
    %622 = vmatpush1.msra.mxu0 0.0
    %623 = vmatprep.subr.mxu0 0.0
    %624 = vmatpush1.msra.mxu0 0.0
    %625 = vmatprep.subr.mxu0 0.0
    %626 = vmatpush1.msra.mxu0 0.0
    %627 = vmatprep.subr.mxu0 0.0
    %628 = vmatpush1.msra.mxu0 0.0
    %629 = vmatprep.subr.mxu0 0.0
    %630 = vmatpush1.msra.mxu0 0.0
    %631 = vmatprep.subr.mxu0 0.0
    %632 = vmatpush1.msra.mxu0 0.0
    %633 = vmatprep.subr.mxu0 0.0
    %634 = vmatpush1.msra.mxu0 0.0
    %635 = vmatprep.subr.mxu0 0.0
    %636 = vmatpush1.msra.mxu0 0.0
    %637 = vmatprep.subr.mxu0 0.0
    %638 = vmatpush1.msra.mxu0 0.0
    %639 = vmatprep.subr.mxu0 0.0
    %640 = vmatpush1.msra.mxu0 0.0
    %641 = vmatprep.subr.mxu0 0.0
    %642 = vmatpush1.msra.mxu0 0.0
    %643 = vmatprep.subr.mxu0 0.0
    %644 = vmatpush1.msra.mxu0 0.0
    %645 = vmatprep.subr.mxu0 0.0
    %646 = vmatpush1.msra.mxu0 0.0
    %647 = vmatprep.subr.mxu0 0.0
    %648 = vmatpush1.msra.mxu0 0.0
    %649 = vmatprep.subr.mxu0 0.0
    %650 = vmatpush1.msra.mxu0 0.0
    %651 = vmatprep.mubr.f32.mxu0 0.0
    %652 = vmatmul.mubr.f32.gmra.mrb[0].mxu0 %v580
    %v653 = vpop.f32.mrb[0].mxu0
    %v654 = vadd.f32 0.0, %v653
    %v655 = vpop.f32.mrb[0].mxu0
    %v656 = vadd.f32 0.0, %v655
    %657 = vdwg.mxu0
    %658 = vmatprep.subr.mxu0 0.0
    %659 = vmatpush1.msra.mxu0 %v367
    %660 = vmatprep.subr.mxu0 0.0
    %661 = vmatpush1.msra.mxu0 %v370
    %662 = vmatprep.subr.mxu0 0.0
    %663 = vmatpush1.msra.mxu0 %v373
    %664 = vmatprep.subr.mxu0 0.0
    %665 = vmatpush1.msra.mxu0 %v376
    %666 = vmatprep.subr.mxu0 0.0
    %667 = vmatpush1.msra.mxu0 %v379
    %668 = vmatprep.subr.mxu0 0.0
    %669 = vmatpush1.msra.mxu0 %v382
    %670 = vmatprep.subr.mxu0 0.0
    %671 = vmatpush1.msra.mxu0 %v385
    %672 = vmatprep.subr.mxu0 0.0
    %673 = vmatpush1.msra.mxu0 %v388
    %674 = vmatprep.subr.mxu0 0.0
    %675 = vmatpush1.msra.mxu0 %v391
    %676 = vmatprep.subr.mxu0 0.0
    %677 = vmatpush1.msra.mxu0 %v394
    %678 = vmatprep.subr.mxu0 0.0
    %679 = vmatpush1.msra.mxu0 %v397
    %680 = vmatprep.subr.mxu0 0.0
    %681 = vmatpush1.msra.mxu0 %v400
    %682 = vmatprep.subr.mxu0 0.0
    %683 = vmatpush1.msra.mxu0 %v403
    %684 = vmatprep.subr.mxu0 0.0
    %685 = vmatpush1.msra.mxu0 %v406
    %686 = vmatprep.subr.mxu0 0.0
    %687 = vmatpush1.msra.mxu0 %v409
    %688 = vmatprep.subr.mxu0 0.0
    %689 = vmatpush1.msra.mxu0 %v412
    %690 = vmatprep.subr.mxu0 0.0
    %691 = vmatpush1.msra.mxu0 0.0
    %692 = vmatprep.subr.mxu0 0.0
    %693 = vmatpush1.msra.mxu0 0.0
    %694 = vmatprep.subr.mxu0 0.0
    %695 = vmatpush1.msra.mxu0 0.0
    %696 = vmatprep.subr.mxu0 0.0
    %697 = vmatpush1.msra.mxu0 0.0
    %698 = vmatprep.subr.mxu0 0.0
    %699 = vmatpush1.msra.mxu0 0.0
    %700 = vmatprep.subr.mxu0 0.0
    %701 = vmatpush1.msra.mxu0 0.0
    %702 = vmatprep.subr.mxu0 0.0
    %703 = vmatpush1.msra.mxu0 0.0
    %704 = vmatprep.subr.mxu0 0.0
    %705 = vmatpush1.msra.mxu0 0.0
    %706 = vmatprep.subr.mxu0 0.0
    %707 = vmatpush1.msra.mxu0 0.0
    %708 = vmatprep.subr.mxu0 0.0
    %709 = vmatpush1.msra.mxu0 0.0
    %710 = vmatprep.subr.mxu0 0.0
    %711 = vmatpush1.msra.mxu0 0.0
    %712 = vmatprep.subr.mxu0 0.0
    %713 = vmatpush1.msra.mxu0 0.0
    %714 = vmatprep.subr.mxu0 0.0
    %715 = vmatpush1.msra.mxu0 0.0
    %716 = vmatprep.subr.mxu0 0.0
    %717 = vmatpush1.msra.mxu0 0.0
    %718 = vmatprep.subr.mxu0 0.0
    %719 = vmatpush1.msra.mxu0 0.0
    %720 = vmatprep.subr.mxu0 0.0
    %721 = vmatpush1.msra.mxu0 0.0
    %722 = vmatprep.mubr.f32.mxu0 0.0
    %723 = vmatmul.mubr.f32.gmra.mrb[0].mxu0 %v580
    %v724 = vpop.f32.mrb[0].mxu0
    %v725 = vadd.f32 0.0, %v724
    %v726 = vpop.f32.mrb[0].mxu0
    %727 = vdwg.mxu0
    %v728 = vadd.f32 %v584, %v654
    %v729 = vxor.u32 %v728, 2147483648
    %v730 = vmul.f32 %v729, 1.442695
    %v731 = vpow.pop %v730
    %v732 = vadd.f32 %v731, 1.0
    %v733 = vrcp.pop %v732
    %v734 = vmul.f32 1.0, %v733
    %v735 = vadd.f32 %v585, %v656
    %v736 = vxor.u32 %v735, 2147483648
    %v737 = vmul.f32 %v736, 1.442695
    %v738 = vpow.pop %v737
    %v739 = vadd.f32 %v738, 1.0
    %v740 = vrcp.pop %v739
    %v741 = vmul.f32 1.0, %v740
    %v742 = vadd.f32 %v725, %v572
    %v743 = vmul.f32 %v734, %v742
    %v744 = vadd.f32 %v586, %v743
    %v745 = vtanh.pop %v744
    %v746 = vsub.f32 %v580, %v745
    %v747 = vmul.f32 %v741, %v746
    %v748 = vadd.f32 %v745, %v747
    %s749 = smul.u32 2, 3
    %s750 = smul.addr %s749, 8
    %s751 = scalar_lea.vmem [#allocation2], %s750
    %v752 = vld [vmem:[%s751] sm:$0xff]
    %v753 = vld [vmem:[%s751 + $0x8] sm:$0xff]
    %v754 = vld [vmem:[%s751 + $0x10] sm:$0xff]
    %755 = vmatprep.subr.mxu0 %v366
    %756 = vmatpush1.msra.mxu0 %v365
    %757 = vmatprep.subr.mxu0 %v369
    %758 = vmatpush1.msra.mxu0 %v368
    %759 = vmatprep.subr.mxu0 %v372
    %760 = vmatpush1.msra.mxu0 %v371
    %761 = vmatprep.subr.mxu0 %v375
    %762 = vmatpush1.msra.mxu0 %v374
    %763 = vmatprep.subr.mxu0 %v378
    %764 = vmatpush1.msra.mxu0 %v377
    %765 = vmatprep.subr.mxu0 %v381
    %766 = vmatpush1.msra.mxu0 %v380
    %767 = vmatprep.subr.mxu0 %v384
    %768 = vmatpush1.msra.mxu0 %v383
    %769 = vmatprep.subr.mxu0 %v387
    %770 = vmatpush1.msra.mxu0 %v386
    %771 = vmatprep.subr.mxu0 %v390
    %772 = vmatpush1.msra.mxu0 %v389
    %773 = vmatprep.subr.mxu0 %v393
    %774 = vmatpush1.msra.mxu0 %v392
    %775 = vmatprep.subr.mxu0 %v396
    %776 = vmatpush1.msra.mxu0 %v395
    %777 = vmatprep.subr.mxu0 %v399
    %778 = vmatpush1.msra.mxu0 %v398
    %779 = vmatprep.subr.mxu0 %v402
    %780 = vmatpush1.msra.mxu0 %v401
    %781 = vmatprep.subr.mxu0 %v405
    %782 = vmatpush1.msra.mxu0 %v404
    %783 = vmatprep.subr.mxu0 %v408
    %784 = vmatpush1.msra.mxu0 %v407
    %785 = vmatprep.subr.mxu0 %v411
    %786 = vmatpush1.msra.mxu0 %v410
    %787 = vmatprep.subr.mxu0 0.0
    %788 = vmatpush1.msra.mxu0 0.0
    %789 = vmatprep.subr.mxu0 0.0
    %790 = vmatpush1.msra.mxu0 0.0
    %791 = vmatprep.subr.mxu0 0.0
    %792 = vmatpush1.msra.mxu0 0.0
    %793 = vmatprep.subr.mxu0 0.0
    %794 = vmatpush1.msra.mxu0 0.0
    %795 = vmatprep.subr.mxu0 0.0
    %796 = vmatpush1.msra.mxu0 0.0
    %797 = vmatprep.subr.mxu0 0.0
    %798 = vmatpush1.msra.mxu0 0.0
    %799 = vmatprep.subr.mxu0 0.0
    %800 = vmatpush1.msra.mxu0 0.0
    %801 = vmatprep.subr.mxu0 0.0
    %802 = vmatpush1.msra.mxu0 0.0
    %803 = vmatprep.subr.mxu0 0.0
    %804 = vmatpush1.msra.mxu0 0.0
    %805 = vmatprep.subr.mxu0 0.0
    %806 = vmatpush1.msra.mxu0 0.0
    %807 = vmatprep.subr.mxu0 0.0
    %808 = vmatpush1.msra.mxu0 0.0
    %809 = vmatprep.subr.mxu0 0.0
    %810 = vmatpush1.msra.mxu0 0.0
    %811 = vmatprep.subr.mxu0 0.0
    %812 = vmatpush1.msra.mxu0 0.0
    %813 = vmatprep.subr.mxu0 0.0
    %814 = vmatpush1.msra.mxu0 0.0
    %815 = vmatprep.subr.mxu0 0.0
    %816 = vmatpush1.msra.mxu0 0.0
    %817 = vmatprep.subr.mxu0 0.0
    %818 = vmatpush1.msra.mxu0 0.0
    %819 = vmatprep.mubr.f32.mxu0 0.0
    %820 = vmatmul.mubr.f32.gmra.mrb[0].mxu0 %v748
    %v821 = vpop.f32.mrb[0].mxu0
    %v822 = vadd.f32 0.0, %v821
    %v823 = vpop.f32.mrb[0].mxu0
    %v824 = vadd.f32 0.0, %v823
    %825 = vdwg.mxu0
    %826 = vmatprep.subr.mxu0 0.0
    %827 = vmatpush1.msra.mxu0 %v367
    %828 = vmatprep.subr.mxu0 0.0
    %829 = vmatpush1.msra.mxu0 %v370
    %830 = vmatprep.subr.mxu0 0.0
    %831 = vmatpush1.msra.mxu0 %v373
    %832 = vmatprep.subr.mxu0 0.0
    %833 = vmatpush1.msra.mxu0 %v376
    %834 = vmatprep.subr.mxu0 0.0
    %835 = vmatpush1.msra.mxu0 %v379
    %836 = vmatprep.subr.mxu0 0.0
    %837 = vmatpush1.msra.mxu0 %v382
    %838 = vmatprep.subr.mxu0 0.0
    %839 = vmatpush1.msra.mxu0 %v385
    %840 = vmatprep.subr.mxu0 0.0
    %841 = vmatpush1.msra.mxu0 %v388
    %842 = vmatprep.subr.mxu0 0.0
    %843 = vmatpush1.msra.mxu0 %v391
    %844 = vmatprep.subr.mxu0 0.0
    %845 = vmatpush1.msra.mxu0 %v394
    %846 = vmatprep.subr.mxu0 0.0
    %847 = vmatpush1.msra.mxu0 %v397
    %848 = vmatprep.subr.mxu0 0.0
    %849 = vmatpush1.msra.mxu0 %v400
    %850 = vmatprep.subr.mxu0 0.0
    %851 = vmatpush1.msra.mxu0 %v403
    %852 = vmatprep.subr.mxu0 0.0
    %853 = vmatpush1.msra.mxu0 %v406
    %854 = vmatprep.subr.mxu0 0.0
    %855 = vmatpush1.msra.mxu0 %v409
    %856 = vmatprep.subr.mxu0 0.0
    %857 = vmatpush1.msra.mxu0 %v412
    %858 = vmatprep.subr.mxu0 0.0
    %859 = vmatpush1.msra.mxu0 0.0
    %860 = vmatprep.subr.mxu0 0.0
    %861 = vmatpush1.msra.mxu0 0.0
    %862 = vmatprep.subr.mxu0 0.0
    %863 = vmatpush1.msra.mxu0 0.0
    %864 = vmatprep.subr.mxu0 0.0
    %865 = vmatpush1.msra.mxu0 0.0
    %866 = vmatprep.subr.mxu0 0.0
    %867 = vmatpush1.msra.mxu0 0.0
    %868 = vmatprep.subr.mxu0 0.0
    %869 = vmatpush1.msra.mxu0 0.0
    %870 = vmatprep.subr.mxu0 0.0
    %871 = vmatpush1.msra.mxu0 0.0
    %872 = vmatprep.subr.mxu0 0.0
    %873 = vmatpush1.msra.mxu0 0.0
    %874 = vmatprep.subr.mxu0 0.0
    %875 = vmatpush1.msra.mxu0 0.0
    %876 = vmatprep.subr.mxu0 0.0
    %877 = vmatpush1.msra.mxu0 0.0
    %878 = vmatprep.subr.mxu0 0.0
    %879 = vmatpush1.msra.mxu0 0.0
    %880 = vmatprep.subr.mxu0 0.0
    %881 = vmatpush1.msra.mxu0 0.0
    %882 = vmatprep.subr.mxu0 0.0
    %883 = vmatpush1.msra.mxu0 0.0
    %884 = vmatprep.subr.mxu0 0.0
    %885 = vmatpush1.msra.mxu0 0.0
    %886 = vmatprep.subr.mxu0 0.0
    %887 = vmatpush1.msra.mxu0 0.0
    %888 = vmatprep.subr.mxu0 0.0
    %889 = vmatpush1.msra.mxu0 0.0
    %890 = vmatprep.mubr.f32.mxu0 0.0
    %891 = vmatmul.mubr.f32.gmra.mrb[0].mxu0 %v748
    %v892 = vpop.f32.mrb[0].mxu0
    %v893 = vadd.f32 0.0, %v892
    %v894 = vpop.f32.mrb[0].mxu0
    %895 = vdwg.mxu0
    %v896 = vadd.f32 %v752, %v822
    %v897 = vxor.u32 %v896, 2147483648
    %v898 = vmul.f32 %v897, 1.442695
    %v899 = vpow.pop %v898
    %v900 = vadd.f32 %v899, 1.0
    %v901 = vrcp.pop %v900
    %v902 = vmul.f32 1.0, %v901
    %v903 = vadd.f32 %v753, %v824
    %v904 = vxor.u32 %v903, 2147483648
    %v905 = vmul.f32 %v904, 1.442695
    %v906 = vpow.pop %v905
    %v907 = vadd.f32 %v906, 1.0
    %v908 = vrcp.pop %v907
    %v909 = vmul.f32 1.0, %v908
    %v910 = vadd.f32 %v893, %v572
    %v911 = vmul.f32 %v902, %v910
    %v912 = vadd.f32 %v754, %v911
    %v913 = vtanh.pop %v912
    %v914 = vsub.f32 %v748, %v913
    %v915 = vmul.f32 %v909, %v914
    %v916 = vadd.f32 %v913, %v915
    %s917 = smul.u32 3, 3
    %s918 = smul.addr %s917, 8
    %s919 = scalar_lea.vmem [#allocation2], %s918
    %v920 = vld [vmem:[%s919] sm:$0xff]
    %v921 = vld [vmem:[%s919 + $0x8] sm:$0xff]
    %v922 = vld [vmem:[%s919 + $0x10] sm:$0xff]
    %923 = vmatprep.subr.mxu0 %v366
    %924 = vmatpush1.msra.mxu0 %v365
    %925 = vmatprep.subr.mxu0 %v369
    %926 = vmatpush1.msra.mxu0 %v368
    %927 = vmatprep.subr.mxu0 %v372
    %928 = vmatpush1.msra.mxu0 %v371
    %929 = vmatprep.subr.mxu0 %v375
    %930 = vmatpush1.msra.mxu0 %v374
    %931 = vmatprep.subr.mxu0 %v378
    %932 = vmatpush1.msra.mxu0 %v377
    %933 = vmatprep.subr.mxu0 %v381
    %934 = vmatpush1.msra.mxu0 %v380
    %935 = vmatprep.subr.mxu0 %v384
    %936 = vmatpush1.msra.mxu0 %v383
    %937 = vmatprep.subr.mxu0 %v387
    %938 = vmatpush1.msra.mxu0 %v386
    %939 = vmatprep.subr.mxu0 %v390
    %940 = vmatpush1.msra.mxu0 %v389
    %941 = vmatprep.subr.mxu0 %v393
    %942 = vmatpush1.msra.mxu0 %v392
    %943 = vmatprep.subr.mxu0 %v396
    %944 = vmatpush1.msra.mxu0 %v395
    %945 = vmatprep.subr.mxu0 %v399
    %946 = vmatpush1.msra.mxu0 %v398
    %947 = vmatprep.subr.mxu0 %v402
    %948 = vmatpush1.msra.mxu0 %v401
    %949 = vmatprep.subr.mxu0 %v405
    %950 = vmatpush1.msra.mxu0 %v404
    %951 = vmatprep.subr.mxu0 %v408
    %952 = vmatpush1.msra.mxu0 %v407
    %953 = vmatprep.subr.mxu0 %v411
    %954 = vmatpush1.msra.mxu0 %v410
    %955 = vmatprep.subr.mxu0 0.0
    %956 = vmatpush1.msra.mxu0 0.0
    %957 = vmatprep.subr.mxu0 0.0
    %958 = vmatpush1.msra.mxu0 0.0
    %959 = vmatprep.subr.mxu0 0.0
    %960 = vmatpush1.msra.mxu0 0.0
    %961 = vmatprep.subr.mxu0 0.0
    %962 = vmatpush1.msra.mxu0 0.0
    %963 = vmatprep.subr.mxu0 0.0
    %964 = vmatpush1.msra.mxu0 0.0
    %965 = vmatprep.subr.mxu0 0.0
    %966 = vmatpush1.msra.mxu0 0.0
    %967 = vmatprep.subr.mxu0 0.0
    %968 = vmatpush1.msra.mxu0 0.0
    %969 = vmatprep.subr.mxu0 0.0
    %970 = vmatpush1.msra.mxu0 0.0
    %971 = vmatprep.subr.mxu0 0.0
    %972 = vmatpush1.msra.mxu0 0.0
    %973 = vmatprep.subr.mxu0 0.0
    %974 = vmatpush1.msra.mxu0 0.0
    %975 = vmatprep.subr.mxu0 0.0
    %976 = vmatpush1.msra.mxu0 0.0
    %977 = vmatprep.subr.mxu0 0.0
    %978 = vmatpush1.msra.mxu0 0.0
    %979 = vmatprep.subr.mxu0 0.0
    %980 = vmatpush1.msra.mxu0 0.0
    %981 = vmatprep.subr.mxu0 0.0
    %982 = vmatpush1.msra.mxu0 0.0
    %983 = vmatprep.subr.mxu0 0.0
    %984 = vmatpush1.msra.mxu0 0.0
    %985 = vmatprep.subr.mxu0 0.0
    %986 = vmatpush1.msra.mxu0 0.0
    %987 = vmatprep.mubr.f32.mxu0 0.0
    %988 = vmatmul.mubr.f32.gmra.mrb[0].mxu0 %v916
    %v989 = vpop.f32.mrb[0].mxu0
    %v990 = vadd.f32 0.0, %v989
    %v991 = vpop.f32.mrb[0].mxu0
    %v992 = vadd.f32 0.0, %v991
    %993 = vdwg.mxu0
    %994 = vmatprep.subr.mxu0 0.0
    %995 = vmatpush1.msra.mxu0 %v367
    %996 = vmatprep.subr.mxu0 0.0
    %997 = vmatpush1.msra.mxu0 %v370
    %998 = vmatprep.subr.mxu0 0.0
    %999 = vmatpush1.msra.mxu0 %v373
    %1000 = vmatprep.subr.mxu0 0.0
    %1001 = vmatpush1.msra.mxu0 %v376
    %1002 = vmatprep.subr.mxu0 0.0
    %1003 = vmatpush1.msra.mxu0 %v379
    %1004 = vmatprep.subr.mxu0 0.0
    %1005 = vmatpush1.msra.mxu0 %v382
    %1006 = vmatprep.subr.mxu0 0.0
    %1007 = vmatpush1.msra.mxu0 %v385
    %1008 = vmatprep.subr.mxu0 0.0
    %1009 = vmatpush1.msra.mxu0 %v388
    %1010 = vmatprep.subr.mxu0 0.0
    %1011 = vmatpush1.msra.mxu0 %v391
    %1012 = vmatprep.subr.mxu0 0.0
    %1013 = vmatpush1.msra.mxu0 %v394
    %1014 = vmatprep.subr.mxu0 0.0
    %1015 = vmatpush1.msra.mxu0 %v397
    %1016 = vmatprep.subr.mxu0 0.0
    %1017 = vmatpush1.msra.mxu0 %v400
    %1018 = vmatprep.subr.mxu0 0.0
    %1019 = vmatpush1.msra.mxu0 %v403
    %1020 = vmatprep.subr.mxu0 0.0
    %1021 = vmatpush1.msra.mxu0 %v406
    %1022 = vmatprep.subr.mxu0 0.0
    %1023 = vmatpush1.msra.mxu0 %v409
    %1024 = vmatprep.subr.mxu0 0.0
    %1025 = vmatpush1.msra.mxu0 %v412
    %1026 = vmatprep.subr.mxu0 0.0
    %1027 = vmatpush1.msra.mxu0 0.0
    %1028 = vmatprep.subr.mxu0 0.0
    %1029 = vmatpush1.msra.mxu0 0.0
    %1030 = vmatprep.subr.mxu0 0.0
    %1031 = vmatpush1.msra.mxu0 0.0
    %1032 = vmatprep.subr.mxu0 0.0
    %1033 = vmatpush1.msra.mxu0 0.0
    %1034 = vmatprep.subr.mxu0 0.0
    %1035 = vmatpush1.msra.mxu0 0.0
    %1036 = vmatprep.subr.mxu0 0.0
    %1037 = vmatpush1.msra.mxu0 0.0
    %1038 = vmatprep.subr.mxu0 0.0
    %1039 = vmatpush1.msra.mxu0 0.0
    %1040 = vmatprep.subr.mxu0 0.0
    %1041 = vmatpush1.msra.mxu0 0.0
    %1042 = vmatprep.subr.mxu0 0.0
    %1043 = vmatpush1.msra.mxu0 0.0
    %1044 = vmatprep.subr.mxu0 0.0
    %1045 = vmatpush1.msra.mxu0 0.0
    %1046 = vmatprep.subr.mxu0 0.0
    %1047 = vmatpush1.msra.mxu0 0.0
    %1048 = vmatprep.subr.mxu0 0.0
    %1049 = vmatpush1.msra.mxu0 0.0
    %1050 = vmatprep.subr.mxu0 0.0
    %1051 = vmatpush1.msra.mxu0 0.0
    %1052 = vmatprep.subr.mxu0 0.0
    %1053 = vmatpush1.msra.mxu0 0.0
    %1054 = vmatprep.subr.mxu0 0.0
    %1055 = vmatpush1.msra.mxu0 0.0
    %1056 = vmatprep.subr.mxu0 0.0
    %1057 = vmatpush1.msra.mxu0 0.0
    %1058 = vmatprep.mubr.f32.mxu0 0.0
    %1059 = vmatmul.mubr.f32.gmra.mrb[0].mxu0 %v916
    %v1060 = vpop.f32.mrb[0].mxu0
    %v1061 = vadd.f32 0.0, %v1060
    %v1062 = vpop.f32.mrb[0].mxu0
    %1063 = vdwg.mxu0
    %v1064 = vadd.f32 %v920, %v990
    %v1065 = vxor.u32 %v1064, 2147483648
    %v1066 = vmul.f32 %v1065, 1.442695
    %v1067 = vpow.pop %v1066
    %v1068 = vadd.f32 %v1067, 1.0
    %v1069 = vrcp.pop %v1068
    %v1070 = vmul.f32 1.0, %v1069
    %v1071 = vadd.f32 %v921, %v992
    %v1072 = vxor.u32 %v1071, 2147483648
    %v1073 = vmul.f32 %v1072, 1.442695
    %v1074 = vpow.pop %v1073
    %v1075 = vadd.f32 %v1074, 1.0
    %v1076 = vrcp.pop %v1075
    %v1077 = vmul.f32 1.0, %v1076
    %v1078 = vadd.f32 %v1061, %v572
    %v1079 = vmul.f32 %v1070, %v1078
    %v1080 = vadd.f32 %v922, %v1079
    %v1081 = vtanh.pop %v1080
    %v1082 = vsub.f32 %v916, %v1081
    %v1083 = vmul.f32 %v1077, %v1082
    %v1084 = vadd.f32 %v1081, %v1083
    %s1085 = smul.u32 4, 3
    %s1086 = smul.addr %s1085, 8
    %s1087 = scalar_lea.vmem [#allocation2], %s1086
    %v1088 = vld [vmem:[%s1087] sm:$0xff]
    %v1089 = vld [vmem:[%s1087 + $0x8] sm:$0xff]
    %v1090 = vld [vmem:[%s1087 + $0x10] sm:$0xff]
    %1091 = vmatprep.subr.mxu0 %v366
    %1092 = vmatpush1.msra.mxu0 %v365
    %1093 = vmatprep.subr.mxu0 %v369
    %1094 = vmatpush1.msra.mxu0 %v368
    %1095 = vmatprep.subr.mxu0 %v372
    %1096 = vmatpush1.msra.mxu0 %v371
    %1097 = vmatprep.subr.mxu0 %v375
    %1098 = vmatpush1.msra.mxu0 %v374
    %1099 = vmatprep.subr.mxu0 %v378
    %1100 = vmatpush1.msra.mxu0 %v377
    %1101 = vmatprep.subr.mxu0 %v381
    %1102 = vmatpush1.msra.mxu0 %v380
    %1103 = vmatprep.subr.mxu0 %v384
    %1104 = vmatpush1.msra.mxu0 %v383
    %1105 = vmatprep.subr.mxu0 %v387
    %1106 = vmatpush1.msra.mxu0 %v386
    %1107 = vmatprep.subr.mxu0 %v390
    %1108 = vmatpush1.msra.mxu0 %v389
    %1109 = vmatprep.subr.mxu0 %v393
    %1110 = vmatpush1.msra.mxu0 %v392
    %1111 = vmatprep.subr.mxu0 %v396
    %1112 = vmatpush1.msra.mxu0 %v395
    %1113 = vmatprep.subr.mxu0 %v399
    %1114 = vmatpush1.msra.mxu0 %v398
    %1115 = vmatprep.subr.mxu0 %v402
    %1116 = vmatpush1.msra.mxu0 %v401
    %1117 = vmatprep.subr.mxu0 %v405
    %1118 = vmatpush1.msra.mxu0 %v404
    %1119 = vmatprep.subr.mxu0 %v408
    %1120 = vmatpush1.msra.mxu0 %v407
    %1121 = vmatprep.subr.mxu0 %v411
    %1122 = vmatpush1.msra.mxu0 %v410
    %1123 = vmatprep.subr.mxu0 0.0
    %1124 = vmatpush1.msra.mxu0 0.0
    %1125 = vmatprep.subr.mxu0 0.0
    %1126 = vmatpush1.msra.mxu0 0.0
    %1127 = vmatprep.subr.mxu0 0.0
    %1128 = vmatpush1.msra.mxu0 0.0
    %1129 = vmatprep.subr.mxu0 0.0
    %1130 = vmatpush1.msra.mxu0 0.0
    %1131 = vmatprep.subr.mxu0 0.0
    %1132 = vmatpush1.msra.mxu0 0.0
    %1133 = vmatprep.subr.mxu0 0.0
    %1134 = vmatpush1.msra.mxu0 0.0
    %1135 = vmatprep.subr.mxu0 0.0
    %1136 = vmatpush1.msra.mxu0 0.0
    %1137 = vmatprep.subr.mxu0 0.0
    %1138 = vmatpush1.msra.mxu0 0.0
    %1139 = vmatprep.subr.mxu0 0.0
    %1140 = vmatpush1.msra.mxu0 0.0
    %1141 = vmatprep.subr.mxu0 0.0
    %1142 = vmatpush1.msra.mxu0 0.0
    %1143 = vmatprep.subr.mxu0 0.0
    %1144 = vmatpush1.msra.mxu0 0.0
    %1145 = vmatprep.subr.mxu0 0.0
    %1146 = vmatpush1.msra.mxu0 0.0
    %1147 = vmatprep.subr.mxu0 0.0
    %1148 = vmatpush1.msra.mxu0 0.0
    %1149 = vmatprep.subr.mxu0 0.0
    %1150 = vmatpush1.msra.mxu0 0.0
    %1151 = vmatprep.subr.mxu0 0.0
    %1152 = vmatpush1.msra.mxu0 0.0
    %1153 = vmatprep.subr.mxu0 0.0
    %1154 = vmatpush1.msra.mxu0 0.0
    %1155 = vmatprep.mubr.f32.mxu0 0.0
    %1156 = vmatmul.mubr.f32.gmra.mrb[0].mxu0 %v1084
    %v1157 = vpop.f32.mrb[0].mxu0
    %v1158 = vadd.f32 0.0, %v1157
    %v1159 = vpop.f32.mrb[0].mxu0
    %v1160 = vadd.f32 0.0, %v1159
    %1161 = vdwg.mxu0
    %1162 = vmatprep.subr.mxu0 0.0
    %1163 = vmatpush1.msra.mxu0 %v367
    %1164 = vmatprep.subr.mxu0 0.0
    %1165 = vmatpush1.msra.mxu0 %v370
    %1166 = vmatprep.subr.mxu0 0.0
    %1167 = vmatpush1.msra.mxu0 %v373
    %1168 = vmatprep.subr.mxu0 0.0
    %1169 = vmatpush1.msra.mxu0 %v376
    %1170 = vmatprep.subr.mxu0 0.0
    %1171 = vmatpush1.msra.mxu0 %v379
    %1172 = vmatprep.subr.mxu0 0.0
    %1173 = vmatpush1.msra.mxu0 %v382
    %1174 = vmatprep.subr.mxu0 0.0
    %1175 = vmatpush1.msra.mxu0 %v385
    %1176 = vmatprep.subr.mxu0 0.0
    %1177 = vmatpush1.msra.mxu0 %v388
    %1178 = vmatprep.subr.mxu0 0.0
    %1179 = vmatpush1.msra.mxu0 %v391
    %1180 = vmatprep.subr.mxu0 0.0
    %1181 = vmatpush1.msra.mxu0 %v394
    %1182 = vmatprep.subr.mxu0 0.0
    %1183 = vmatpush1.msra.mxu0 %v397
    %1184 = vmatprep.subr.mxu0 0.0
    %1185 = vmatpush1.msra.mxu0 %v400
    %1186 = vmatprep.subr.mxu0 0.0
    %1187 = vmatpush1.msra.mxu0 %v403
    %1188 = vmatprep.subr.mxu0 0.0
    %1189 = vmatpush1.msra.mxu0 %v406
    %1190 = vmatprep.subr.mxu0 0.0
    %1191 = vmatpush1.msra.mxu0 %v409
    %1192 = vmatprep.subr.mxu0 0.0
    %1193 = vmatpush1.msra.mxu0 %v412
    %1194 = vmatprep.subr.mxu0 0.0
    %1195 = vmatpush1.msra.mxu0 0.0
    %1196 = vmatprep.subr.mxu0 0.0
    %1197 = vmatpush1.msra.mxu0 0.0
    %1198 = vmatprep.subr.mxu0 0.0
    %1199 = vmatpush1.msra.mxu0 0.0
    %1200 = vmatprep.subr.mxu0 0.0
    %1201 = vmatpush1.msra.mxu0 0.0
    %1202 = vmatprep.subr.mxu0 0.0
    %1203 = vmatpush1.msra.mxu0 0.0
    %1204 = vmatprep.subr.mxu0 0.0
    %1205 = vmatpush1.msra.mxu0 0.0
    %1206 = vmatprep.subr.mxu0 0.0
    %1207 = vmatpush1.msra.mxu0 0.0
    %1208 = vmatprep.subr.mxu0 0.0
    %1209 = vmatpush1.msra.mxu0 0.0
    %1210 = vmatprep.subr.mxu0 0.0
    %1211 = vmatpush1.msra.mxu0 0.0
    %1212 = vmatprep.subr.mxu0 0.0
    %1213 = vmatpush1.msra.mxu0 0.0
    %1214 = vmatprep.subr.mxu0 0.0
    %1215 = vmatpush1.msra.mxu0 0.0
    %1216 = vmatprep.subr.mxu0 0.0
    %1217 = vmatpush1.msra.mxu0 0.0
    %1218 = vmatprep.subr.mxu0 0.0
    %1219 = vmatpush1.msra.mxu0 0.0
    %1220 = vmatprep.subr.mxu0 0.0
    %1221 = vmatpush1.msra.mxu0 0.0
    %1222 = vmatprep.subr.mxu0 0.0
    %1223 = vmatpush1.msra.mxu0 0.0
    %1224 = vmatprep.subr.mxu0 0.0
    %1225 = vmatpush1.msra.mxu0 0.0
    %1226 = vmatprep.mubr.f32.mxu0 0.0
    %1227 = vmatmul.mubr.f32.gmra.mrb[0].mxu0 %v1084
    %v1228 = vpop.f32.mrb[0].mxu0
    %v1229 = vadd.f32 0.0, %v1228
    %v1230 = vpop.f32.mrb[0].mxu0
    %1231 = vdwg.mxu0
    %v1232 = vadd.f32 %v1088, %v1158
    %v1233 = vxor.u32 %v1232, 2147483648
    %v1234 = vmul.f32 %v1233, 1.442695
    %v1235 = vpow.pop %v1234
    %v1236 = vadd.f32 %v1235, 1.0
    %v1237 = vrcp.pop %v1236
    %v1238 = vmul.f32 1.0, %v1237
    %v1239 = vadd.f32 %v1089, %v1160
    %v1240 = vxor.u32 %v1239, 2147483648
    %v1241 = vmul.f32 %v1240, 1.442695
    %v1242 = vpow.pop %v1241
    %v1243 = vadd.f32 %v1242, 1.0
    %v1244 = vrcp.pop %v1243
    %v1245 = vmul.f32 1.0, %v1244
    %v1246 = vadd.f32 %v1229, %v572
    %v1247 = vmul.f32 %v1238, %v1246
    %v1248 = vadd.f32 %v1090, %v1247
    %v1249 = vtanh.pop %v1248
    %v1250 = vsub.f32 %v1084, %v1249
    %v1251 = vmul.f32 %v1245, %v1250
    %v1252 = vadd.f32 %v1249, %v1251
    %s1253 = smul.u32 5, 3
    %s1254 = smul.addr %s1253, 8
    %s1255 = scalar_lea.vmem [#allocation2], %s1254
    %v1256 = vld [vmem:[%s1255] sm:$0xff]
    %v1257 = vld [vmem:[%s1255 + $0x8] sm:$0xff]
    %v1258 = vld [vmem:[%s1255 + $0x10] sm:$0xff]
    %1259 = vmatprep.subr.mxu0 %v366
    %1260 = vmatpush1.msra.mxu0 %v365
    %1261 = vmatprep.subr.mxu0 %v369
    %1262 = vmatpush1.msra.mxu0 %v368
    %1263 = vmatprep.subr.mxu0 %v372
    %1264 = vmatpush1.msra.mxu0 %v371
    %1265 = vmatprep.subr.mxu0 %v375
    %1266 = vmatpush1.msra.mxu0 %v374
    %1267 = vmatprep.subr.mxu0 %v378
    %1268 = vmatpush1.msra.mxu0 %v377
    %1269 = vmatprep.subr.mxu0 %v381
    %1270 = vmatpush1.msra.mxu0 %v380
    %1271 = vmatprep.subr.mxu0 %v384
    %1272 = vmatpush1.msra.mxu0 %v383
    %1273 = vmatprep.subr.mxu0 %v387
    %1274 = vmatpush1.msra.mxu0 %v386
    %1275 = vmatprep.subr.mxu0 %v390
    %1276 = vmatpush1.msra.mxu0 %v389
    %1277 = vmatprep.subr.mxu0 %v393
    %1278 = vmatpush1.msra.mxu0 %v392
    %1279 = vmatprep.subr.mxu0 %v396
    %1280 = vmatpush1.msra.mxu0 %v395
    %1281 = vmatprep.subr.mxu0 %v399
    %1282 = vmatpush1.msra.mxu0 %v398
    %1283 = vmatprep.subr.mxu0 %v402
    %1284 = vmatpush1.msra.mxu0 %v401
    %1285 = vmatprep.subr.mxu0 %v405
    %1286 = vmatpush1.msra.mxu0 %v404
    %1287 = vmatprep.subr.mxu0 %v408
    %1288 = vmatpush1.msra.mxu0 %v407
    %1289 = vmatprep.subr.mxu0 %v411
    %1290 = vmatpush1.msra.mxu0 %v410
    %1291 = vmatprep.subr.mxu0 0.0
    %1292 = vmatpush1.msra.mxu0 0.0
    %1293 = vmatprep.subr.mxu0 0.0
    %1294 = vmatpush1.msra.mxu0 0.0
    %1295 = vmatprep.subr.mxu0 0.0
    %1296 = vmatpush1.msra.mxu0 0.0
    %1297 = vmatprep.subr.mxu0 0.0
    %1298 = vmatpush1.msra.mxu0 0.0
    %1299 = vmatprep.subr.mxu0 0.0
    %1300 = vmatpush1.msra.mxu0 0.0
    %1301 = vmatprep.subr.mxu0 0.0
    %1302 = vmatpush1.msra.mxu0 0.0
    %1303 = vmatprep.subr.mxu0 0.0
    %1304 = vmatpush1.msra.mxu0 0.0
    %1305 = vmatprep.subr.mxu0 0.0
    %1306 = vmatpush1.msra.mxu0 0.0
    %1307 = vmatprep.subr.mxu0 0.0
    %1308 = vmatpush1.msra.mxu0 0.0
    %1309 = vmatprep.subr.mxu0 0.0
    %1310 = vmatpush1.msra.mxu0 0.0
    %1311 = vmatprep.subr.mxu0 0.0
    %1312 = vmatpush1.msra.mxu0 0.0
    %1313 = vmatprep.subr.mxu0 0.0
    %1314 = vmatpush1.msra.mxu0 0.0
    %1315 = vmatprep.subr.mxu0 0.0
    %1316 = vmatpush1.msra.mxu0 0.0
    %1317 = vmatprep.subr.mxu0 0.0
    %1318 = vmatpush1.msra.mxu0 0.0
    %1319 = vmatprep.subr.mxu0 0.0
    %1320 = vmatpush1.msra.mxu0 0.0
    %1321 = vmatprep.subr.mxu0 0.0
    %1322 = vmatpush1.msra.mxu0 0.0
    %1323 = vmatprep.mubr.f32.mxu0 0.0
    %1324 = vmatmul.mubr.f32.gmra.mrb[0].mxu0 %v1252
    %v1325 = vpop.f32.mrb[0].mxu0
    %v1326 = vadd.f32 0.0, %v1325
    %v1327 = vpop.f32.mrb[0].mxu0
    %v1328 = vadd.f32 0.0, %v1327
    %1329 = vdwg.mxu0
    %1330 = vmatprep.subr.mxu0 0.0
    %1331 = vmatpush1.msra.mxu0 %v367
    %1332 = vmatprep.subr.mxu0 0.0
    %1333 = vmatpush1.msra.mxu0 %v370
    %1334 = vmatprep.subr.mxu0 0.0
    %1335 = vmatpush1.msra.mxu0 %v373
    %1336 = vmatprep.subr.mxu0 0.0
    %1337 = vmatpush1.msra.mxu0 %v376
    %1338 = vmatprep.subr.mxu0 0.0
    %1339 = vmatpush1.msra.mxu0 %v379
    %1340 = vmatprep.subr.mxu0 0.0
    %1341 = vmatpush1.msra.mxu0 %v382
    %1342 = vmatprep.subr.mxu0 0.0
    %1343 = vmatpush1.msra.mxu0 %v385
    %1344 = vmatprep.subr.mxu0 0.0
    %1345 = vmatpush1.msra.mxu0 %v388
    %1346 = vmatprep.subr.mxu0 0.0
    %1347 = vmatpush1.msra.mxu0 %v391
    %1348 = vmatprep.subr.mxu0 0.0
    %1349 = vmatpush1.msra.mxu0 %v394
    %1350 = vmatprep.subr.mxu0 0.0
    %1351 = vmatpush1.msra.mxu0 %v397
    %1352 = vmatprep.subr.mxu0 0.0
    %1353 = vmatpush1.msra.mxu0 %v400
    %1354 = vmatprep.subr.mxu0 0.0
    %1355 = vmatpush1.msra.mxu0 %v403
    %1356 = vmatprep.subr.mxu0 0.0
    %1357 = vmatpush1.msra.mxu0 %v406
    %1358 = vmatprep.subr.mxu0 0.0
    %1359 = vmatpush1.msra.mxu0 %v409
    %1360 = vmatprep.subr.mxu0 0.0
    %1361 = vmatpush1.msra.mxu0 %v412
    %1362 = vmatprep.subr.mxu0 0.0
    %1363 = vmatpush1.msra.mxu0 0.0
    %1364 = vmatprep.subr.mxu0 0.0
    %1365 = vmatpush1.msra.mxu0 0.0
    %1366 = vmatprep.subr.mxu0 0.0
    %1367 = vmatpush1.msra.mxu0 0.0
    %1368 = vmatprep.subr.mxu0 0.0
    %1369 = vmatpush1.msra.mxu0 0.0
    %1370 = vmatprep.subr.mxu0 0.0
    %1371 = vmatpush1.msra.mxu0 0.0
    %1372 = vmatprep.subr.mxu0 0.0
    %1373 = vmatpush1.msra.mxu0 0.0
    %1374 = vmatprep.subr.mxu0 0.0
    %1375 = vmatpush1.msra.mxu0 0.0
    %1376 = vmatprep.subr.mxu0 0.0
    %1377 = vmatpush1.msra.mxu0 0.0
    %1378 = vmatprep.subr.mxu0 0.0
    %1379 = vmatpush1.msra.mxu0 0.0
    %1380 = vmatprep.subr.mxu0 0.0
    %1381 = vmatpush1.msra.mxu0 0.0
    %1382 = vmatprep.subr.mxu0 0.0
    %1383 = vmatpush1.msra.mxu0 0.0
    %1384 = vmatprep.subr.mxu0 0.0
    %1385 = vmatpush1.msra.mxu0 0.0
    %1386 = vmatprep.subr.mxu0 0.0
    %1387 = vmatpush1.msra.mxu0 0.0
    %1388 = vmatprep.subr.mxu0 0.0
    %1389 = vmatpush1.msra.mxu0 0.0
    %1390 = vmatprep.subr.mxu0 0.0
    %1391 = vmatpush1.msra.mxu0 0.0
    %1392 = vmatprep.subr.mxu0 0.0
    %1393 = vmatpush1.msra.mxu0 0.0
    %1394 = vmatprep.mubr.f32.mxu0 0.0
    %1395 = vmatmul.mubr.f32.gmra.mrb[0].mxu0 %v1252
    %v1396 = vpop.f32.mrb[0].mxu0
    %v1397 = vadd.f32 0.0, %v1396
    %v1398 = vpop.f32.mrb[0].mxu0
    %1399 = vdwg.mxu0
    %v1400 = vadd.f32 %v1256, %v1326
    %v1401 = vxor.u32 %v1400, 2147483648
    %v1402 = vmul.f32 %v1401, 1.442695
    %v1403 = vpow.pop %v1402
    %v1404 = vadd.f32 %v1403, 1.0
    %v1405 = vrcp.pop %v1404
    %v1406 = vmul.f32 1.0, %v1405
    %v1407 = vadd.f32 %v1257, %v1328
    %v1408 = vxor.u32 %v1407, 2147483648
    %v1409 = vmul.f32 %v1408, 1.442695
    %v1410 = vpow.pop %v1409
    %v1411 = vadd.f32 %v1410, 1.0
    %v1412 = vrcp.pop %v1411
    %v1413 = vmul.f32 1.0, %v1412
    %v1414 = vadd.f32 %v1397, %v572
    %v1415 = vmul.f32 %v1406, %v1414
    %v1416 = vadd.f32 %v1258, %v1415
    %v1417 = vtanh.pop %v1416
    %v1418 = vsub.f32 %v1252, %v1417
    %v1419 = vmul.f32 %v1413, %v1418
    %v1420 = vadd.f32 %v1417, %v1419
    %s1421 = smul.u32 6, 3
    %s1422 = smul.addr %s1421, 8
    %s1423 = scalar_lea.vmem [#allocation2], %s1422
    %v1424 = vld [vmem:[%s1423] sm:$0xff]
    %v1425 = vld [vmem:[%s1423 + $0x8] sm:$0xff]
    %v1426 = vld [vmem:[%s1423 + $0x10] sm:$0xff]
    %1427 = vmatprep.subr.mxu0 %v366
    %1428 = vmatpush1.msra.mxu0 %v365
    %1429 = vmatprep.subr.mxu0 %v369
    %1430 = vmatpush1.msra.mxu0 %v368
    %1431 = vmatprep.subr.mxu0 %v372
    %1432 = vmatpush1.msra.mxu0 %v371
    %1433 = vmatprep.subr.mxu0 %v375
    %1434 = vmatpush1.msra.mxu0 %v374
    %1435 = vmatprep.subr.mxu0 %v378
    %1436 = vmatpush1.msra.mxu0 %v377
    %1437 = vmatprep.subr.mxu0 %v381
    %1438 = vmatpush1.msra.mxu0 %v380
    %1439 = vmatprep.subr.mxu0 %v384
    %1440 = vmatpush1.msra.mxu0 %v383
    %1441 = vmatprep.subr.mxu0 %v387
    %1442 = vmatpush1.msra.mxu0 %v386
    %1443 = vmatprep.subr.mxu0 %v390
    %1444 = vmatpush1.msra.mxu0 %v389
    %1445 = vmatprep.subr.mxu0 %v393
    %1446 = vmatpush1.msra.mxu0 %v392
    %1447 = vmatprep.subr.mxu0 %v396
    %1448 = vmatpush1.msra.mxu0 %v395
    %1449 = vmatprep.subr.mxu0 %v399
    %1450 = vmatpush1.msra.mxu0 %v398
    %1451 = vmatprep.subr.mxu0 %v402
    %1452 = vmatpush1.msra.mxu0 %v401
    %1453 = vmatprep.subr.mxu0 %v405
    %1454 = vmatpush1.msra.mxu0 %v404
    %1455 = vmatprep.subr.mxu0 %v408
    %1456 = vmatpush1.msra.mxu0 %v407
    %1457 = vmatprep.subr.mxu0 %v411
    %1458 = vmatpush1.msra.mxu0 %v410
    %1459 = vmatprep.subr.mxu0 0.0
    %1460 = vmatpush1.msra.mxu0 0.0
    %1461 = vmatprep.subr.mxu0 0.0
    %1462 = vmatpush1.msra.mxu0 0.0
    %1463 = vmatprep.subr.mxu0 0.0
    %1464 = vmatpush1.msra.mxu0 0.0
    %1465 = vmatprep.subr.mxu0 0.0
    %1466 = vmatpush1.msra.mxu0 0.0
    %1467 = vmatprep.subr.mxu0 0.0
    %1468 = vmatpush1.msra.mxu0 0.0
    %1469 = vmatprep.subr.mxu0 0.0
    %1470 = vmatpush1.msra.mxu0 0.0
    %1471 = vmatprep.subr.mxu0 0.0
    %1472 = vmatpush1.msra.mxu0 0.0
    %1473 = vmatprep.subr.mxu0 0.0
    %1474 = vmatpush1.msra.mxu0 0.0
    %1475 = vmatprep.subr.mxu0 0.0
    %1476 = vmatpush1.msra.mxu0 0.0
    %1477 = vmatprep.subr.mxu0 0.0
    %1478 = vmatpush1.msra.mxu0 0.0
    %1479 = vmatprep.subr.mxu0 0.0
    %1480 = vmatpush1.msra.mxu0 0.0
    %1481 = vmatprep.subr.mxu0 0.0
    %1482 = vmatpush1.msra.mxu0 0.0
    %1483 = vmatprep.subr.mxu0 0.0
    %1484 = vmatpush1.msra.mxu0 0.0
    %1485 = vmatprep.subr.mxu0 0.0
    %1486 = vmatpush1.msra.mxu0 0.0
    %1487 = vmatprep.subr.mxu0 0.0
    %1488 = vmatpush1.msra.mxu0 0.0
    %1489 = vmatprep.subr.mxu0 0.0
    %1490 = vmatpush1.msra.mxu0 0.0
    %1491 = vmatprep.mubr.f32.mxu0 0.0
    %1492 = vmatmul.mubr.f32.gmra.mrb[0].mxu0 %v1420
    %v1493 = vpop.f32.mrb[0].mxu0
    %v1494 = vadd.f32 0.0, %v1493
    %v1495 = vpop.f32.mrb[0].mxu0
    %v1496 = vadd.f32 0.0, %v1495
    %1497 = vdwg.mxu0
    %1498 = vmatprep.subr.mxu0 0.0
    %1499 = vmatpush1.msra.mxu0 %v367
    %1500 = vmatprep.subr.mxu0 0.0
    %1501 = vmatpush1.msra.mxu0 %v370
    %1502 = vmatprep.subr.mxu0 0.0
    %1503 = vmatpush1.msra.mxu0 %v373
    %1504 = vmatprep.subr.mxu0 0.0
    %1505 = vmatpush1.msra.mxu0 %v376
    %1506 = vmatprep.subr.mxu0 0.0
    %1507 = vmatpush1.msra.mxu0 %v379
    %1508 = vmatprep.subr.mxu0 0.0
    %1509 = vmatpush1.msra.mxu0 %v382
    %1510 = vmatprep.subr.mxu0 0.0
    %1511 = vmatpush1.msra.mxu0 %v385
    %1512 = vmatprep.subr.mxu0 0.0
    %1513 = vmatpush1.msra.mxu0 %v388
    %1514 = vmatprep.subr.mxu0 0.0
    %1515 = vmatpush1.msra.mxu0 %v391
    %1516 = vmatprep.subr.mxu0 0.0
    %1517 = vmatpush1.msra.mxu0 %v394
    %1518 = vmatprep.subr.mxu0 0.0
    %1519 = vmatpush1.msra.mxu0 %v397
    %1520 = vmatprep.subr.mxu0 0.0
    %1521 = vmatpush1.msra.mxu0 %v400
    %1522 = vmatprep.subr.mxu0 0.0
    %1523 = vmatpush1.msra.mxu0 %v403
    %1524 = vmatprep.subr.mxu0 0.0
    %1525 = vmatpush1.msra.mxu0 %v406
    %1526 = vmatprep.subr.mxu0 0.0
    %1527 = vmatpush1.msra.mxu0 %v409
    %1528 = vmatprep.subr.mxu0 0.0
    %1529 = vmatpush1.msra.mxu0 %v412
    %1530 = vmatprep.subr.mxu0 0.0
    %1531 = vmatpush1.msra.mxu0 0.0
    %1532 = vmatprep.subr.mxu0 0.0
    %1533 = vmatpush1.msra.mxu0 0.0
    %1534 = vmatprep.subr.mxu0 0.0
    %1535 = vmatpush1.msra.mxu0 0.0
    %1536 = vmatprep.subr.mxu0 0.0
    %1537 = vmatpush1.msra.mxu0 0.0
    %1538 = vmatprep.subr.mxu0 0.0
    %1539 = vmatpush1.msra.mxu0 0.0
    %1540 = vmatprep.subr.mxu0 0.0
    %1541 = vmatpush1.msra.mxu0 0.0
    %1542 = vmatprep.subr.mxu0 0.0
    %1543 = vmatpush1.msra.mxu0 0.0
    %1544 = vmatprep.subr.mxu0 0.0
    %1545 = vmatpush1.msra.mxu0 0.0
    %1546 = vmatprep.subr.mxu0 0.0
    %1547 = vmatpush1.msra.mxu0 0.0
    %1548 = vmatprep.subr.mxu0 0.0
    %1549 = vmatpush1.msra.mxu0 0.0
    %1550 = vmatprep.subr.mxu0 0.0
    %1551 = vmatpush1.msra.mxu0 0.0
    %1552 = vmatprep.subr.mxu0 0.0
    %1553 = vmatpush1.msra.mxu0 0.0
    %1554 = vmatprep.subr.mxu0 0.0
    %1555 = vmatpush1.msra.mxu0 0.0
    %1556 = vmatprep.subr.mxu0 0.0
    %1557 = vmatpush1.msra.mxu0 0.0
    %1558 = vmatprep.subr.mxu0 0.0
    %1559 = vmatpush1.msra.mxu0 0.0
    %1560 = vmatprep.subr.mxu0 0.0
    %1561 = vmatpush1.msra.mxu0 0.0
    %1562 = vmatprep.mubr.f32.mxu0 0.0
    %1563 = vmatmul.mubr.f32.gmra.mrb[0].mxu0 %v1420
    %v1564 = vpop.f32.mrb[0].mxu0
    %v1565 = vadd.f32 0.0, %v1564
    %v1566 = vpop.f32.mrb[0].mxu0
    %1567 = vdwg.mxu0
    %v1568 = vadd.f32 %v1424, %v1494
    %v1569 = vxor.u32 %v1568, 2147483648
    %v1570 = vmul.f32 %v1569, 1.442695
    %v1571 = vpow.pop %v1570
    %v1572 = vadd.f32 %v1571, 1.0
    %v1573 = vrcp.pop %v1572
    %v1574 = vmul.f32 1.0, %v1573
    %v1575 = vadd.f32 %v1425, %v1496
    %v1576 = vxor.u32 %v1575, 2147483648
    %v1577 = vmul.f32 %v1576, 1.442695
    %v1578 = vpow.pop %v1577
    %v1579 = vadd.f32 %v1578, 1.0
    %v1580 = vrcp.pop %v1579
    %v1581 = vmul.f32 1.0, %v1580
    %v1582 = vadd.f32 %v1565, %v572
    %v1583 = vmul.f32 %v1574, %v1582
    %v1584 = vadd.f32 %v1426, %v1583
    %v1585 = vtanh.pop %v1584
    %v1586 = vsub.f32 %v1420, %v1585
    %v1587 = vmul.f32 %v1581, %v1586
    %v1588 = vadd.f32 %v1585, %v1587
    %s1589 = smul.u32 7, 3
    %s1590 = smul.addr %s1589, 8
    %s1591 = scalar_lea.vmem [#allocation2], %s1590
    %v1592 = vld [vmem:[%s1591] sm:$0xff]
    %v1593 = vld [vmem:[%s1591 + $0x8] sm:$0xff]
    %v1594 = vld [vmem:[%s1591 + $0x10] sm:$0xff]
    %1595 = vmatprep.subr.mxu0 %v366
    %1596 = vmatpush1.msra.mxu0 %v365
    %1597 = vmatprep.subr.mxu0 %v369
    %1598 = vmatpush1.msra.mxu0 %v368
    %1599 = vmatprep.subr.mxu0 %v372
    %1600 = vmatpush1.msra.mxu0 %v371
    %1601 = vmatprep.subr.mxu0 %v375
    %1602 = vmatpush1.msra.mxu0 %v374
    %1603 = vmatprep.subr.mxu0 %v378
    %1604 = vmatpush1.msra.mxu0 %v377
    %1605 = vmatprep.subr.mxu0 %v381
    %1606 = vmatpush1.msra.mxu0 %v380
    %1607 = vmatprep.subr.mxu0 %v384
    %1608 = vmatpush1.msra.mxu0 %v383
    %1609 = vmatprep.subr.mxu0 %v387
    %1610 = vmatpush1.msra.mxu0 %v386
    %1611 = vmatprep.subr.mxu0 %v390
    %1612 = vmatpush1.msra.mxu0 %v389
    %1613 = vmatprep.subr.mxu0 %v393
    %1614 = vmatpush1.msra.mxu0 %v392
    %1615 = vmatprep.subr.mxu0 %v396
    %1616 = vmatpush1.msra.mxu0 %v395
    %1617 = vmatprep.subr.mxu0 %v399
    %1618 = vmatpush1.msra.mxu0 %v398
    %1619 = vmatprep.subr.mxu0 %v402
    %1620 = vmatpush1.msra.mxu0 %v401
    %1621 = vmatprep.subr.mxu0 %v405
    %1622 = vmatpush1.msra.mxu0 %v404
    %1623 = vmatprep.subr.mxu0 %v408
    %1624 = vmatpush1.msra.mxu0 %v407
    %1625 = vmatprep.subr.mxu0 %v411
    %1626 = vmatpush1.msra.mxu0 %v410
    %1627 = vmatprep.subr.mxu0 0.0
    %1628 = vmatpush1.msra.mxu0 0.0
    %1629 = vmatprep.subr.mxu0 0.0
    %1630 = vmatpush1.msra.mxu0 0.0
    %1631 = vmatprep.subr.mxu0 0.0
    %1632 = vmatpush1.msra.mxu0 0.0
    %1633 = vmatprep.subr.mxu0 0.0
    %1634 = vmatpush1.msra.mxu0 0.0
    %1635 = vmatprep.subr.mxu0 0.0
    %1636 = vmatpush1.msra.mxu0 0.0
    %1637 = vmatprep.subr.mxu0 0.0
    %1638 = vmatpush1.msra.mxu0 0.0
    %1639 = vmatprep.subr.mxu0 0.0
    %1640 = vmatpush1.msra.mxu0 0.0
    %1641 = vmatprep.subr.mxu0 0.0
    %1642 = vmatpush1.msra.mxu0 0.0
    %1643 = vmatprep.subr.mxu0 0.0
    %1644 = vmatpush1.msra.mxu0 0.0
    %1645 = vmatprep.subr.mxu0 0.0
    %1646 = vmatpush1.msra.mxu0 0.0
    %1647 = vmatprep.subr.mxu0 0.0
    %1648 = vmatpush1.msra.mxu0 0.0
    %1649 = vmatprep.subr.mxu0 0.0
    %1650 = vmatpush1.msra.mxu0 0.0
    %1651 = vmatprep.subr.mxu0 0.0
    %1652 = vmatpush1.msra.mxu0 0.0
    %1653 = vmatprep.subr.mxu0 0.0
    %1654 = vmatpush1.msra.mxu0 0.0
    %1655 = vmatprep.subr.mxu0 0.0
    %1656 = vmatpush1.msra.mxu0 0.0
    %1657 = vmatprep.subr.mxu0 0.0
    %1658 = vmatpush1.msra.mxu0 0.0
    %1659 = vmatprep.mubr.f32.mxu0 0.0
    %1660 = vmatmul.mubr.f32.gmra.mrb[0].mxu0 %v1588
    %v1661 = vpop.f32.mrb[0].mxu0
    %v1662 = vadd.f32 0.0, %v1661
    %v1663 = vpop.f32.mrb[0].mxu0
    %v1664 = vadd.f32 0.0, %v1663
    %1665 = vdwg.mxu0
    %1666 = vmatprep.subr.mxu0 0.0
    %1667 = vmatpush1.msra.mxu0 %v367
    %1668 = vmatprep.subr.mxu0 0.0
    %1669 = vmatpush1.msra.mxu0 %v370
    %1670 = vmatprep.subr.mxu0 0.0
    %1671 = vmatpush1.msra.mxu0 %v373
    %1672 = vmatprep.subr.mxu0 0.0
    %1673 = vmatpush1.msra.mxu0 %v376
    %1674 = vmatprep.subr.mxu0 0.0
    %1675 = vmatpush1.msra.mxu0 %v379
    %1676 = vmatprep.subr.mxu0 0.0
    %1677 = vmatpush1.msra.mxu0 %v382
    %1678 = vmatprep.subr.mxu0 0.0
    %1679 = vmatpush1.msra.mxu0 %v385
    %1680 = vmatprep.subr.mxu0 0.0
    %1681 = vmatpush1.msra.mxu0 %v388
    %1682 = vmatprep.subr.mxu0 0.0
    %1683 = vmatpush1.msra.mxu0 %v391
    %1684 = vmatprep.subr.mxu0 0.0
    %1685 = vmatpush1.msra.mxu0 %v394
    %1686 = vmatprep.subr.mxu0 0.0
    %1687 = vmatpush1.msra.mxu0 %v397
    %1688 = vmatprep.subr.mxu0 0.0
    %1689 = vmatpush1.msra.mxu0 %v400
    %1690 = vmatprep.subr.mxu0 0.0
    %1691 = vmatpush1.msra.mxu0 %v403
    %1692 = vmatprep.subr.mxu0 0.0
    %1693 = vmatpush1.msra.mxu0 %v406
    %1694 = vmatprep.subr.mxu0 0.0
    %1695 = vmatpush1.msra.mxu0 %v409
    %1696 = vmatprep.subr.mxu0 0.0
    %1697 = vmatpush1.msra.mxu0 %v412
    %1698 = vmatprep.subr.mxu0 0.0
    %1699 = vmatpush1.msra.mxu0 0.0
    %1700 = vmatprep.subr.mxu0 0.0
    %1701 = vmatpush1.msra.mxu0 0.0
    %1702 = vmatprep.subr.mxu0 0.0
    %1703 = vmatpush1.msra.mxu0 0.0
    %1704 = vmatprep.subr.mxu0 0.0
    %1705 = vmatpush1.msra.mxu0 0.0
    %1706 = vmatprep.subr.mxu0 0.0
    %1707 = vmatpush1.msra.mxu0 0.0
    %1708 = vmatprep.subr.mxu0 0.0
    %1709 = vmatpush1.msra.mxu0 0.0
    %1710 = vmatprep.subr.mxu0 0.0
    %1711 = vmatpush1.msra.mxu0 0.0
    %1712 = vmatprep.subr.mxu0 0.0
    %1713 = vmatpush1.msra.mxu0 0.0
    %1714 = vmatprep.subr.mxu0 0.0
    %1715 = vmatpush1.msra.mxu0 0.0
    %1716 = vmatprep.subr.mxu0 0.0
    %1717 = vmatpush1.msra.mxu0 0.0
    %1718 = vmatprep.subr.mxu0 0.0
    %1719 = vmatpush1.msra.mxu0 0.0
    %1720 = vmatprep.subr.mxu0 0.0
    %1721 = vmatpush1.msra.mxu0 0.0
    %1722 = vmatprep.subr.mxu0 0.0
    %1723 = vmatpush1.msra.mxu0 0.0
    %1724 = vmatprep.subr.mxu0 0.0
    %1725 = vmatpush1.msra.mxu0 0.0
    %1726 = vmatprep.subr.mxu0 0.0
    %1727 = vmatpush1.msra.mxu0 0.0
    %1728 = vmatprep.subr.mxu0 0.0
    %1729 = vmatpush1.msra.mxu0 0.0
    %1730 = vmatprep.mubr.f32.mxu0 0.0
    %1731 = vmatmul.mubr.f32.gmra.mrb[0].mxu0 %v1588
    %v1732 = vpop.f32.mrb[0].mxu0
    %v1733 = vadd.f32 0.0, %v1732
    %v1734 = vpop.f32.mrb[0].mxu0
    %1735 = vdwg.mxu0
    %v1736 = vadd.f32 %v1592, %v1662
    %v1737 = vxor.u32 %v1736, 2147483648
    %v1738 = vmul.f32 %v1737, 1.442695
    %v1739 = vpow.pop %v1738
    %v1740 = vadd.f32 %v1739, 1.0
    %v1741 = vrcp.pop %v1740
    %v1742 = vmul.f32 1.0, %v1741
    %v1743 = vadd.f32 %v1593, %v1664
    %v1744 = vxor.u32 %v1743, 2147483648
    %v1745 = vmul.f32 %v1744, 1.442695
    %v1746 = vpow.pop %v1745
    %v1747 = vadd.f32 %v1746, 1.0
    %v1748 = vrcp.pop %v1747
    %v1749 = vmul.f32 1.0, %v1748
    %v1750 = vadd.f32 %v1733, %v572
    %v1751 = vmul.f32 %v1742, %v1750
    %v1752 = vadd.f32 %v1594, %v1751
    %v1753 = vtanh.pop %v1752
    %v1754 = vsub.f32 %v1588, %v1753
    %v1755 = vmul.f32 %v1749, %v1754
    %v1756 = vadd.f32 %v1753, %v1755
    %v1757 = vld [vmem:[#allocation5] sm:$0xff]
    %v1758 = vld [vmem:[#allocation5 + $0x8] sm:$0xff]
    %v1759 = vld [vmem:[#allocation5 + $0x10] sm:$0xff]
    %v1760 = vld [vmem:[#allocation5 + $0x18] sm:$0xff]
    %v1761 = vld [vmem:[#allocation5 + $0x20] sm:$0xff]
    %v1762 = vld [vmem:[#allocation5 + $0x28] sm:$0xff]
    %v1763 = vld [vmem:[#allocation5 + $0x30] sm:$0xff]
    %v1764 = vld [vmem:[#allocation5 + $0x38] sm:$0xff]
    %v1765 = vld [vmem:[#allocation5 + $0x40] sm:$0xff]
    %v1766 = vld [vmem:[#allocation5 + $0x48] sm:$0xff]
    %v1767 = vld [vmem:[#allocation5 + $0x50] sm:$0xff]
    %v1768 = vld [vmem:[#allocation5 + $0x58] sm:$0xff]
    %v1769 = vld [vmem:[#allocation5 + $0x60] sm:$0xff]
    %v1770 = vld [vmem:[#allocation5 + $0x68] sm:$0xff]
    %v1771 = vld [vmem:[#allocation5 + $0x70] sm:$0xff]
    %v1772 = vld [vmem:[#allocation5 + $0x78] sm:$0xff]
    %v1773 = vld [vmem:[%s6] sm:$0x1]
    %v1775 = vlaneseq
    %v1776 = vshrl.u32 %v1775, 7
    %v1777 = vsub.s32 0, %v1776
    %v1778 = vrot.slane %v1773, %v1777
    %1780 = vmatprep.subr.mxu0 0.0
    %1781 = vmatpush1.msra.mxu0 %v1757
    %1782 = vmatprep.subr.mxu0 0.0
    %1783 = vmatpush1.msra.mxu0 %v1758
    %1784 = vmatprep.subr.mxu0 0.0
    %1785 = vmatpush1.msra.mxu0 %v1759
    %1786 = vmatprep.subr.mxu0 0.0
    %1787 = vmatpush1.msra.mxu0 %v1760
    %1788 = vmatprep.subr.mxu0 0.0
    %1789 = vmatpush1.msra.mxu0 %v1761
    %1790 = vmatprep.subr.mxu0 0.0
    %1791 = vmatpush1.msra.mxu0 %v1762
    %1792 = vmatprep.subr.mxu0 0.0
    %1793 = vmatpush1.msra.mxu0 %v1763
    %1794 = vmatprep.subr.mxu0 0.0
    %1795 = vmatpush1.msra.mxu0 %v1764
    %1796 = vmatprep.subr.mxu0 0.0
    %1797 = vmatpush1.msra.mxu0 %v1765
    %1798 = vmatprep.subr.mxu0 0.0
    %1799 = vmatpush1.msra.mxu0 %v1766
    %1800 = vmatprep.subr.mxu0 0.0
    %1801 = vmatpush1.msra.mxu0 %v1767
    %1802 = vmatprep.subr.mxu0 0.0
    %1803 = vmatpush1.msra.mxu0 %v1768
    %1804 = vmatprep.subr.mxu0 0.0
    %1805 = vmatpush1.msra.mxu0 %v1769
    %1806 = vmatprep.subr.mxu0 0.0
    %1807 = vmatpush1.msra.mxu0 %v1770
    %1808 = vmatprep.subr.mxu0 0.0
    %1809 = vmatpush1.msra.mxu0 %v1771
    %1810 = vmatprep.subr.mxu0 0.0
    %1811 = vmatpush1.msra.mxu0 %v1772
    %1812 = vmatprep.subr.mxu0 0.0
    %1813 = vmatpush1.msra.mxu0 0.0
    %1814 = vmatprep.subr.mxu0 0.0
    %1815 = vmatpush1.msra.mxu0 0.0
    %1816 = vmatprep.subr.mxu0 0.0
    %1817 = vmatpush1.msra.mxu0 0.0
    %1818 = vmatprep.subr.mxu0 0.0
    %1819 = vmatpush1.msra.mxu0 0.0
    %1820 = vmatprep.subr.mxu0 0.0
    %1821 = vmatpush1.msra.mxu0 0.0
    %1822 = vmatprep.subr.mxu0 0.0
    %1823 = vmatpush1.msra.mxu0 0.0
    %1824 = vmatprep.subr.mxu0 0.0
    %1825 = vmatpush1.msra.mxu0 0.0
    %1826 = vmatprep.subr.mxu0 0.0
    %1827 = vmatpush1.msra.mxu0 0.0
    %1828 = vmatprep.subr.mxu0 0.0
    %1829 = vmatpush1.msra.mxu0 0.0
    %1830 = vmatprep.subr.mxu0 0.0
    %1831 = vmatpush1.msra.mxu0 0.0
    %1832 = vmatprep.subr.mxu0 0.0
    %1833 = vmatpush1.msra.mxu0 0.0
    %1834 = vmatprep.subr.mxu0 0.0
    %1835 = vmatpush1.msra.mxu0 0.0
    %1836 = vmatprep.subr.mxu0 0.0
    %1837 = vmatpush1.msra.mxu0 0.0
    %1838 = vmatprep.subr.mxu0 0.0
    %1839 = vmatpush1.msra.mxu0 0.0
    %1840 = vmatprep.subr.mxu0 0.0
    %1841 = vmatpush1.msra.mxu0 0.0
    %1842 = vmatprep.subr.mxu0 0.0
    %1843 = vmatpush1.msra.mxu0 0.0
    %1844 = vmatprep.mubr.f32.mxu0 0.0
    %1845 = vmatmul.mubr.f32.gmra.mrb[0].mxu0 %v1756
    %v1846 = vpop.f32.mrb[0].mxu0
    %v1847 = vadd.f32 %v1778, %v1846
    %v1848 = vpop.f32.mrb[0].mxu0
    %1849 = vdwg.mxu0
    %1850 = vst [vmem:[%s7] sm:$0xff] %v1847
    // Predicated region
    $region38: #{gru_linear_forward.1} parent=1 // pred_check
      _
    $region39: #{gru_linear_forward.1} parent=1 // pred_check_branch
      %1852 = sbr.rel (0) target = $region41
    $region40: #{gru_linear_forward.1} parent=1 // pred_region
      _
    $region41: #{gru_linear_forward.1} parent=1 // pred_fallthru
      _
    // Predicated region
    $region42: #{gru_linear_forward.1} parent=1 // pred_check
      _
    $region43: #{gru_linear_forward.1} parent=1 // pred_check_branch
      %1854 = sbr.rel (0) target = $region45
    $region44: #{gru_linear_forward.1} parent=1 // pred_region
      _
    $region45: #{gru_linear_forward.1} parent=1 // pred_fallthru
      _
    %1855 = vsyncpa [#allocation4], 1
    %1856 = vsyncpa [#allocation6], 1

</llo_original>
